<compile_context>
chip_gen: v5e
topology: v5e:2x2
jax: 0.10.0
libtpu: 0.0.40
codegen_flags: <defaults>
</compile_context>

<pallas_src>
import math

import jax
import jax.numpy as jnp
import numpy as np
from jax.experimental import pallas as pl
from jax.experimental.pallas import tpu as pltpu


# ----------------------------------------------------------------------------
# Pallas kernel: bidirectional LSTM recurrence for one layer
# ----------------------------------------------------------------------------
def _bilstm_recurrence_kernel(gxi_ref, gxf_ref, gxg_ref, gxo_ref,
                              whi_ref, whf_ref, whg_ref, who_ref,
                              out_ref):
    """Grid axis 0 is the direction d (0 = forward in time, 1 = reversed).

    gx*_ref : [T, B, H]  precomputed input projections (x @ W_ih + b), per gate
    wh*_ref : [H, H]     recurrent weights per gate (already transposed)
    out_ref : [T, B, H]  hidden states of this direction, written at the true
                         time index (so no post-hoc reversal is needed)
    """
    T, B, H = out_ref.shape
    d = pl.program_id(0)

    # Hoist the (tiny) recurrent weights out of the time loop.
    w_i = whi_ref[...]
    w_f = whf_ref[...]
    w_g = whg_ref[...]
    w_o = who_ref[...]

    def step(s, carry):
        h, c = carry
        # d == 0 -> t = s ; d == 1 -> t = T - 1 - s   (reversal by index only)
        t = s + d * (T - 1 - 2 * s)
        i_g = jax.nn.sigmoid(
            gxi_ref[t] + jnp.dot(h, w_i, preferred_element_type=jnp.float32))
        f_g = jax.nn.sigmoid(
            gxf_ref[t] + jnp.dot(h, w_f, preferred_element_type=jnp.float32))
        g_g = jnp.tanh(
            gxg_ref[t] + jnp.dot(h, w_g, preferred_element_type=jnp.float32))
        o_g = jax.nn.sigmoid(
            gxo_ref[t] + jnp.dot(h, w_o, preferred_element_type=jnp.float32))
        c_new = f_g * c + i_g * g_g
        h_new = o_g * jnp.tanh(c_new)
        out_ref[t] = h_new
        return h_new, c_new

    zeros = jnp.zeros((B, H), jnp.float32)
    jax.lax.fori_loop(0, T, step, (zeros, zeros), unroll=True)


def bilstm_recurrence(gates_x, w_hh_gates):
    """gates_x: 4 arrays [2, T, B, H] (i,f,g,o); w_hh_gates: 4 arrays [2, H, H].

    Returns hidden states [T, 2, B, H] (dim 1: 0 = fwd, 1 = bwd).
    """
    _, T, B, H = gates_x[0].shape
    gate_spec = pl.BlockSpec((None, T, B, H), lambda d: (d, 0, 0, 0))
    whh_spec = pl.BlockSpec((None, H, H), lambda d: (d, 0, 0))
    return pl.pallas_call(
        _bilstm_recurrence_kernel,
        out_shape=jax.ShapeDtypeStruct((T, 2, B, H), jnp.float32),
        grid_spec=pltpu.PrefetchScalarGridSpec(
            num_scalar_prefetch=0,
            grid=(2,),                               # direction axis
            in_specs=[gate_spec] * 4 + [whh_spec] * 4,
            out_specs=pl.BlockSpec((T, None, B, H), lambda d: (0, d, 0, 0)),
        ),
        compiler_params=pltpu.CompilerParams(
            dimension_semantics=("parallel",)),      # fwd/bwd on separate TCs (v7x)
    )(*gates_x, *w_hh_gates)


# ----------------------------------------------------------------------------
# Forward pass (matches TextRNN.forward, eval mode)
# ----------------------------------------------------------------------------
def text_rnn_forward(params, x_ids):
    """x_ids: int32 [B, T] -> logits float32 [B, output_size]."""
    B, T = x_ids.shape
    H = params["lstm"][0]["fwd"]["w_hh"].shape[1]

    # Embedding gather directly into time-major layout (only the tiny id matrix
    # is transposed, not the activation tensor).
    # TODO(synk): embedding gather left to XLA (data-dependent gather has no
    # cheap BlockSpec equivalent at these shapes).
    x_tm = jnp.take(params["embedding"], jnp.transpose(x_ids), axis=0)  # [T,B,E]

    for layer in params["lstm"]:
        d_in = x_tm.shape[-1]
        w_ih = jnp.stack([layer["fwd"]["w_ih"].T,
                          layer["bwd"]["w_ih"].T])                  # [2, Din, 4H]
        w_hh = jnp.stack([layer["fwd"]["w_hh"].T,
                          layer["bwd"]["w_hh"].T])                  # [2, H, 4H]
        bias = jnp.stack([layer["fwd"]["b_ih"] + layer["fwd"]["b_hh"],
                          layer["bwd"]["b_ih"] + layer["bwd"]["b_hh"]])  # [2, 4H]

        # Hoisted input projection: one [T*B, Din] x [Din, 4H] matmul per
        # direction (MXU-friendly), leaving only h @ W_hh on the sequential path.
        x2d = x_tm.reshape(T * B, d_in)
        gx = jnp.einsum("nd,kdg->kng", x2d, w_ih) + bias[:, None, :]  # [2, T*B, 4H]
        gx = gx.reshape(2, T, B, 4 * H)
        gates_x = tuple(gx[..., k * H:(k + 1) * H] for k in range(4))     # i,f,g,o
        w_hh_gates = tuple(w_hh[..., k * H:(k + 1) * H] for k in range(4))

        y = bilstm_recurrence(gates_x, w_hh_gates)                   # [T, 2, B, H]
        x_tm = jnp.transpose(y, (0, 2, 1, 3)).reshape(T, B, 2 * H)   # [fwd ; bwd]
        # TODO(synk): inter-layer dropout omitted (eval-mode semantics, no-op).

    last = x_tm[-1]                                                  # out[:, -1, :]
    # Final fc left to XLA: a [B,2H]x[2H,4] pallas_call would be pure launch
    # overhead with fully-masked stores.
    return last @ params["fc_w"].T + params["fc_b"]


# ----------------------------------------------------------------------------
# Pure-JAX reference (correctness check against PyTorch semantics)
# ----------------------------------------------------------------------------
def _lstm_direction_ref(x_tm, w_ih, w_hh, b_ih, b_hh, reverse):
    T, B, _ = x_tm.shape
    H = w_hh.shape[1]
    w_ih_t, w_hh_t, b = w_ih.T, w_hh.T, b_ih + b_hh

    def step(carry, x):
        h, c = carry
        gates = x @ w_ih_t + h @ w_hh_t + b
        i = jax.nn.sigmoid(gates[:, 0:H])
        f = jax.nn.sigmoid(gates[:, H:2 * H])
        g = jnp.tanh(gates[:, 2 * H:3 * H])
        o = jax.nn.sigmoid(gates[:, 3 * H:4 * H])
        c = f * c + i * g
        h = o * jnp.tanh(c)
        return (h, c), h

    h0 = jnp.zeros((B, H), jnp.float32)
    c0 = jnp.zeros((B, H), jnp.float32)
    xs = x_tm[::-1] if reverse else x_tm
    _, hs = jax.lax.scan(step, (h0, c0), xs)
    return hs[::-1] if reverse else hs


def text_rnn_reference(params, x_ids):
    x_tm = jnp.take(params["embedding"], jnp.transpose(x_ids), axis=0)
    for layer in params["lstm"]:
        f, b = layer["fwd"], layer["bwd"]
        fwd = _lstm_direction_ref(x_tm, f["w_ih"], f["w_hh"], f["b_ih"],
                                  f["b_hh"], reverse=False)
        bwd = _lstm_direction_ref(x_tm, b["w_ih"], b["w_hh"], b["b_ih"],
                                  b["b_hh"], reverse=True)
        x_tm = jnp.concatenate([fwd, bwd], axis=-1)
    last = x_tm[-1]
    return last @ params["fc_w"].T + params["fc_b"]


# ----------------------------------------------------------------------------
# Deterministic parameter construction (shapes follow the PyTorch module)
# ----------------------------------------------------------------------------
def init_params(key, vocab_size, embedding_dim, hidden_size, output_size,
                num_layers):
    keys = iter(jax.random.split(key, 3 + num_layers * 2 * 4))

    def unif(shape, scale):
        return jax.random.uniform(next(keys), shape, jnp.float32, -scale, scale)

    params = {"embedding": jax.random.normal(
        next(keys), (vocab_size, embedding_dim), jnp.float32)}

    k = 1.0 / math.sqrt(hidden_size)
    layers = []
    for l in range(num_layers):
        d_in = embedding_dim if l == 0 else 2 * hidden_size
        layer = {}
        for direction in ("fwd", "bwd"):
            layer[direction] = {
                "w_ih": unif((4 * hidden_size, d_in), k),          # torch weight_ih
                "w_hh": unif((4 * hidden_size, hidden_size), k),   # torch weight_hh
                "b_ih": unif((4 * hidden_size,), k),
                "b_hh": unif((4 * hidden_size,), k),
            }
        layers.append(layer)
    params["lstm"] = layers

    kf = 1.0 / math.sqrt(2 * hidden_size)
    params["fc_w"] = unif((output_size, 2 * hidden_size), kf)      # torch Linear
    params["fc_b"] = unif((output_size,), kf)
    return params


# ----------------------------------------------------------------------------
if __name__ == "__main__":
    VOCAB = 50
    EMBED_DIM = 32     # config.embedding_dim
    HID_DIM = 32       # config.hid_dim
    OUTPUT_SIZE = 4    # config.output_size
    N_LAYERS = 2       # config.n_layers
    B, T = 2, 8

    key = jax.random.PRNGKey(0)
    k_param, k_data = jax.random.split(key)
    params = init_params(k_param, VOCAB, EMBED_DIM, HID_DIM, OUTPUT_SIZE,
                         N_LAYERS)
    x_ids = jax.random.randint(k_data, (B, T), 0, VOCAB, dtype=jnp.int32)

    fwd_fn = jax.jit(text_rnn_forward)
    out = jax.block_until_ready(fwd_fn(params, x_ids))
    ref = jax.block_until_ready(text_rnn_reference(params, x_ids))

    assert out.shape == (B, OUTPUT_SIZE), out.shape
    np.testing.assert_allclose(np.asarray(out), np.asarray(ref),
                               rtol=1e-4, atol=1e-5)
    print("KERNEL_OK")
</pallas_src>

<mosaic_0001>
module attributes {stable_mosaic.version = 11 : i64} {
  func.func @_bilstm_recurrence_kernel(%arg0: i32, %arg1: memref<1x8x2x32xf32, #tpu.memory_space<vmem>>, %arg2: memref<1x8x2x32xf32, #tpu.memory_space<vmem>>, %arg3: memref<1x8x2x32xf32, #tpu.memory_space<vmem>>, %arg4: memref<1x8x2x32xf32, #tpu.memory_space<vmem>>, %arg5: memref<1x32x32xf32, #tpu.memory_space<vmem>>, %arg6: memref<1x32x32xf32, #tpu.memory_space<vmem>>, %arg7: memref<1x32x32xf32, #tpu.memory_space<vmem>>, %arg8: memref<1x32x32xf32, #tpu.memory_space<vmem>>, %arg9: memref<8x1x2x32xf32, #tpu.memory_space<vmem>>) attributes {dimension_semantics = [#tpu.dimension_semantics<parallel>], iteration_bounds = array<i64: 2>, scalar_prefetch = 0 : i64, scratch_operands = 0 : i64, tpu.core_type = #tpu.core_type<tc>, window_params = [{transform_indices = @transform_0, window_bounds = array<i64: 1, 8, 2, 32>}, {transform_indices = @transform_1, window_bounds = array<i64: 1, 8, 2, 32>}, {transform_indices = @transform_2, window_bounds = array<i64: 1, 8, 2, 32>}, {transform_indices = @transform_3, window_bounds = array<i64: 1, 8, 2, 32>}, {transform_indices = @transform_4, window_bounds = array<i64: 1, 32, 32>}, {transform_indices = @transform_5, window_bounds = array<i64: 1, 32, 32>}, {transform_indices = @transform_6, window_bounds = array<i64: 1, 32, 32>}, {transform_indices = @transform_7, window_bounds = array<i64: 1, 32, 32>}, {transform_indices = @transform_8, window_bounds = array<i64: 8, 1, 2, 32>}]} {
    %c0 = arith.constant 0 : index
    %c0_0 = arith.constant 0 : index
    %c0_1 = arith.constant 0 : index
    %0 = vector.load %arg5[%c0, %c0_0, %c0_1] : memref<1x32x32xf32, #tpu.memory_space<vmem>>, vector<1x32x32xf32>
    %1 = vector.shape_cast %0 : vector<1x32x32xf32> to vector<32x32xf32>
    %c0_2 = arith.constant 0 : index
    %c0_3 = arith.constant 0 : index
    %c0_4 = arith.constant 0 : index
    %2 = vector.load %arg6[%c0_2, %c0_3, %c0_4] : memref<1x32x32xf32, #tpu.memory_space<vmem>>, vector<1x32x32xf32>
    %3 = vector.shape_cast %2 : vector<1x32x32xf32> to vector<32x32xf32>
    %c0_5 = arith.constant 0 : index
    %c0_6 = arith.constant 0 : index
    %c0_7 = arith.constant 0 : index
    %4 = vector.load %arg7[%c0_5, %c0_6, %c0_7] : memref<1x32x32xf32, #tpu.memory_space<vmem>>, vector<1x32x32xf32>
    %5 = vector.shape_cast %4 : vector<1x32x32xf32> to vector<32x32xf32>
    %c0_8 = arith.constant 0 : index
    %c0_9 = arith.constant 0 : index
    %c0_10 = arith.constant 0 : index
    %6 = vector.load %arg8[%c0_8, %c0_9, %c0_10] : memref<1x32x32xf32, #tpu.memory_space<vmem>>, vector<1x32x32xf32>
    %7 = vector.shape_cast %6 : vector<1x32x32xf32> to vector<32x32xf32>
    %cst = arith.constant 0.000000e+00 : f32
    %8 = vector.broadcast %cst : f32 to vector<2x32xf32>
    %c0_i32 = arith.constant 0 : i32
    %c2_i32 = arith.constant 2 : i32
    %9 = arith.muli %c2_i32, %c0_i32 : i32
    %c7_i32 = arith.constant 7 : i32
    %10 = arith.subi %c7_i32, %9 : i32
    %11 = arith.muli %arg0, %10 : i32
    %12 = arith.addi %c0_i32, %11 : i32
    %c0_11 = arith.constant 0 : index
    %13 = arith.index_cast %12 : i32 to index
    %c0_12 = arith.constant 0 : index
    %c0_13 = arith.constant 0 : index
    %14 = vector.load %arg1[%c0_11, %13, %c0_12, %c0_13] : memref<1x8x2x32xf32, #tpu.memory_space<vmem>>, vector<1x1x2x32xf32>
    %15 = vector.shape_cast %14 : vector<1x1x2x32xf32> to vector<2x32xf32>
    %cst_14 = arith.constant dense<0.000000e+00> : vector<2x32xf32>
    %16 = tpu.matmul %8, %1, %cst_14 {dimension_numbers = #tpu.dot_dimension_numbers<[1], [0], [0], [1], [0, 0, 1, 1], [], []>} : vector<2x32xf32>, vector<32x32xf32>, vector<2x32xf32> -> vector<2x32xf32>
    %17 = arith.addf %15, %16 : vector<2x32xf32>
    %18 = arith.negf %17 : vector<2x32xf32>
    %19 = math.exp %18 : vector<2x32xf32>
    %cst_15 = arith.constant 1.000000e+00 : f32
    %20 = vector.broadcast %cst_15 : f32 to vector<2x32xf32>
    %21 = arith.addf %20, %19 : vector<2x32xf32>
    %22 = arith.divf %20, %21 : vector<2x32xf32>
    %c0_16 = arith.constant 0 : index
    %23 = arith.index_cast %12 : i32 to index
    %c0_17 = arith.constant 0 : index
    %c0_18 = arith.constant 0 : index
    %24 = vector.load %arg2[%c0_16, %23, %c0_17, %c0_18] : memref<1x8x2x32xf32, #tpu.memory_space<vmem>>, vector<1x1x2x32xf32>
    %25 = vector.shape_cast %24 : vector<1x1x2x32xf32> to vector<2x32xf32>
    %cst_19 = arith.constant dense<0.000000e+00> : vector<2x32xf32>
    %26 = tpu.matmul %8, %3, %cst_19 {dimension_numbers = #tpu.dot_dimension_numbers<[1], [0], [0], [1], [0, 0, 1, 1], [], []>} : vector<2x32xf32>, vector<32x32xf32>, vector<2x32xf32> -> vector<2x32xf32>
    %27 = arith.addf %25, %26 : vector<2x32xf32>
    %28 = arith.negf %27 : vector<2x32xf32>
    %29 = math.exp %28 : vector<2x32xf32>
    %cst_20 = arith.constant 1.000000e+00 : f32
    %30 = vector.broadcast %cst_20 : f32 to vector<2x32xf32>
    %31 = arith.addf %30, %29 : vector<2x32xf32>
    %32 = arith.divf %30, %31 : vector<2x32xf32>
    %c0_21 = arith.constant 0 : index
    %33 = arith.index_cast %12 : i32 to index
    %c0_22 = arith.constant 0 : index
    %c0_23 = arith.constant 0 : index
    %34 = vector.load %arg3[%c0_21, %33, %c0_22, %c0_23] : memref<1x8x2x32xf32, #tpu.memory_space<vmem>>, vector<1x1x2x32xf32>
    %35 = vector.shape_cast %34 : vector<1x1x2x32xf32> to vector<2x32xf32>
    %cst_24 = arith.constant dense<0.000000e+00> : vector<2x32xf32>
    %36 = tpu.matmul %8, %5, %cst_24 {dimension_numbers = #tpu.dot_dimension_numbers<[1], [0], [0], [1], [0, 0, 1, 1], [], []>} : vector<2x32xf32>, vector<32x32xf32>, vector<2x32xf32> -> vector<2x32xf32>
    %37 = arith.addf %35, %36 : vector<2x32xf32>
    %38 = math.tanh %37 : vector<2x32xf32>
    %c0_25 = arith.constant 0 : index
    %39 = arith.index_cast %12 : i32 to index
    %c0_26 = arith.constant 0 : index
    %c0_27 = arith.constant 0 : index
    %40 = vector.load %arg4[%c0_25, %39, %c0_26, %c0_27] : memref<1x8x2x32xf32, #tpu.memory_space<vmem>>, vector<1x1x2x32xf32>
    %41 = vector.shape_cast %40 : vector<1x1x2x32xf32> to vector<2x32xf32>
    %cst_28 = arith.constant dense<0.000000e+00> : vector<2x32xf32>
    %42 = tpu.matmul %8, %7, %cst_28 {dimension_numbers = #tpu.dot_dimension_numbers<[1], [0], [0], [1], [0, 0, 1, 1], [], []>} : vector<2x32xf32>, vector<32x32xf32>, vector<2x32xf32> -> vector<2x32xf32>
    %43 = arith.addf %41, %42 : vector<2x32xf32>
    %44 = arith.negf %43 : vector<2x32xf32>
    %45 = math.exp %44 : vector<2x32xf32>
    %cst_29 = arith.constant 1.000000e+00 : f32
    %46 = vector.broadcast %cst_29 : f32 to vector<2x32xf32>
    %47 = arith.addf %46, %45 : vector<2x32xf32>
    %48 = arith.divf %46, %47 : vector<2x32xf32>
    %49 = arith.mulf %32, %8 : vector<2x32xf32>
    %50 = arith.mulf %22, %38 : vector<2x32xf32>
    %51 = arith.addf %49, %50 : vector<2x32xf32>
    %52 = math.tanh %51 : vector<2x32xf32>
    %53 = arith.mulf %48, %52 : vector<2x32xf32>
    %54 = arith.index_cast %12 : i32 to index
    %c0_30 = arith.constant 0 : index
    %c0_31 = arith.constant 0 : index
    %c0_32 = arith.constant 0 : index
    %55 = vector.load %arg9[%54, %c0_30, %c0_31, %c0_32] : memref<8x1x2x32xf32, #tpu.memory_space<vmem>>, vector<1x1x2x32xf32>
    %56 = vector.shape_cast %55 : vector<1x1x2x32xf32> to vector<2x32xf32>
    %57 = vector.shape_cast %53 : vector<2x32xf32> to vector<1x1x2x32xf32>
    tpu.vector_store %arg9[%54, %c0_30, %c0_31, %c0_32], %57 {strides = array<i32>} : memref<8x1x2x32xf32, #tpu.memory_space<vmem>>, vector<1x1x2x32xf32>,
    %c1_i32 = arith.constant 1 : i32
    %c2_i32_33 = arith.constant 2 : i32
    %58 = arith.muli %c2_i32_33, %c1_i32 : i32
    %c7_i32_34 = arith.constant 7 : i32
    %59 = arith.subi %c7_i32_34, %58 : i32
    %60 = arith.muli %arg0, %59 : i32
    %61 = arith.addi %c1_i32, %60 : i32
    %c0_35 = arith.constant 0 : index
    %62 = arith.index_cast %61 : i32 to index
    %c0_36 = arith.constant 0 : index
    %c0_37 = arith.constant 0 : index
    %63 = vector.load %arg1[%c0_35, %62, %c0_36, %c0_37] : memref<1x8x2x32xf32, #tpu.memory_space<vmem>>, vector<1x1x2x32xf32>
    %64 = vector.shape_cast %63 : vector<1x1x2x32xf32> to vector<2x32xf32>
    %cst_38 = arith.constant dense<0.000000e+00> : vector<2x32xf32>
    %65 = tpu.matmul %53, %1, %cst_38 {dimension_numbers = #tpu.dot_dimension_numbers<[1], [0], [0], [1], [0, 0, 1, 1], [], []>} : vector<2x32xf32>, vector<32x32xf32>, vector<2x32xf32> -> vector<2x32xf32>
    %66 = arith.addf %64, %65 : vector<2x32xf32>
    %67 = arith.negf %66 : vector<2x32xf32>
    %68 = math.exp %67 : vector<2x32xf32>
    %cst_39 = arith.constant 1.000000e+00 : f32
    %69 = vector.broadcast %cst_39 : f32 to vector<2x32xf32>
    %70 = arith.addf %69, %68 : vector<2x32xf32>
    %71 = arith.divf %69, %70 : vector<2x32xf32>
    %c0_40 = arith.constant 0 : index
    %72 = arith.index_cast %61 : i32 to index
    %c0_41 = arith.constant 0 : index
    %c0_42 = arith.constant 0 : index
    %73 = vector.load %arg2[%c0_40, %72, %c0_41, %c0_42] : memref<1x8x2x32xf32, #tpu.memory_space<vmem>>, vector<1x1x2x32xf32>
    %74 = vector.shape_cast %73 : vector<1x1x2x32xf32> to vector<2x32xf32>
    %cst_43 = arith.constant dense<0.000000e+00> : vector<2x32xf32>
    %75 = tpu.matmul %53, %3, %cst_43 {dimension_numbers = #tpu.dot_dimension_numbers<[1], [0], [0], [1], [0, 0, 1, 1], [], []>} : vector<2x32xf32>, vector<32x32xf32>, vector<2x32xf32> -> vector<2x32xf32>
    %76 = arith.addf %74, %75 : vector<2x32xf32>
    %77 = arith.negf %76 : vector<2x32xf32>
    %78 = math.exp %77 : vector<2x32xf32>
    %cst_44 = arith.constant 1.000000e+00 : f32
    %79 = vector.broadcast %cst_44 : f32 to vector<2x32xf32>
    %80 = arith.addf %79, %78 : vector<2x32xf32>
    %81 = arith.divf %79, %80 : vector<2x32xf32>
    %c0_45 = arith.constant 0 : index
    %82 = arith.index_cast %61 : i32 to index
    %c0_46 = arith.constant 0 : index
    %c0_47 = arith.constant 0 : index
    %83 = vector.load %arg3[%c0_45, %82, %c0_46, %c0_47] : memref<1x8x2x32xf32, #tpu.memory_space<vmem>>, vector<1x1x2x32xf32>
    %84 = vector.shape_cast %83 : vector<1x1x2x32xf32> to vector<2x32xf32>
    %cst_48 = arith.constant dense<0.000000e+00> : vector<2x32xf32>
    %85 = tpu.matmul %53, %5, %cst_48 {dimension_numbers = #tpu.dot_dimension_numbers<[1], [0], [0], [1], [0, 0, 1, 1], [], []>} : vector<2x32xf32>, vector<32x32xf32>, vector<2x32xf32> -> vector<2x32xf32>
    %86 = arith.addf %84, %85 : vector<2x32xf32>
    %87 = math.tanh %86 : vector<2x32xf32>
    %c0_49 = arith.constant 0 : index
    %88 = arith.index_cast %61 : i32 to index
    %c0_50 = arith.constant 0 : index
    %c0_51 = arith.constant 0 : index
    %89 = vector.load %arg4[%c0_49, %88, %c0_50, %c0_51] : memref<1x8x2x32xf32, #tpu.memory_space<vmem>>, vector<1x1x2x32xf32>
    %90 = vector.shape_cast %89 : vector<1x1x2x32xf32> to vector<2x32xf32>
    %cst_52 = arith.constant dense<0.000000e+00> : vector<2x32xf32>
    %91 = tpu.matmul %53, %7, %cst_52 {dimension_numbers = #tpu.dot_dimension_numbers<[1], [0], [0], [1], [0, 0, 1, 1], [], []>} : vector<2x32xf32>, vector<32x32xf32>, vector<2x32xf32> -> vector<2x32xf32>
    %92 = arith.addf %90, %91 : vector<2x32xf32>
    %93 = arith.negf %92 : vector<2x32xf32>
    %94 = math.exp %93 : vector<2x32xf32>
    %cst_53 = arith.constant 1.000000e+00 : f32
    %95 = vector.broadcast %cst_53 : f32 to vector<2x32xf32>
    %96 = arith.addf %95, %94 : vector<2x32xf32>
    %97 = arith.divf %95, %96 : vector<2x32xf32>
    %98 = arith.mulf %81, %51 : vector<2x32xf32>
    %99 = arith.mulf %71, %87 : vector<2x32xf32>
    %100 = arith.addf %98, %99 : vector<2x32xf32>
    %101 = math.tanh %100 : vector<2x32xf32>
    %102 = arith.mulf %97, %101 : vector<2x32xf32>
    %103 = arith.index_cast %61 : i32 to index
    %c0_54 = arith.constant 0 : index
    %c0_55 = arith.constant 0 : index
    %c0_56 = arith.constant 0 : index
    %104 = vector.load %arg9[%103, %c0_54, %c0_55, %c0_56] : memref<8x1x2x32xf32, #tpu.memory_space<vmem>>, vector<1x1x2x32xf32>
    %105 = vector.shape_cast %104 : vector<1x1x2x32xf32> to vector<2x32xf32>
    %106 = vector.shape_cast %102 : vector<2x32xf32> to vector<1x1x2x32xf32>
    tpu.vector_store %arg9[%103, %c0_54, %c0_55, %c0_56], %106 {strides = array<i32>} : memref<8x1x2x32xf32, #tpu.memory_space<vmem>>, vector<1x1x2x32xf32>,
    %c2_i32_57 = arith.constant 2 : i32
    %c2_i32_58 = arith.constant 2 : i32
    %107 = arith.muli %c2_i32_58, %c2_i32_57 : i32
    %c7_i32_59 = arith.constant 7 : i32
    %108 = arith.subi %c7_i32_59, %107 : i32
    %109 = arith.muli %arg0, %108 : i32
    %110 = arith.addi %c2_i32_57, %109 : i32
    %c0_60 = arith.constant 0 : index
    %111 = arith.index_cast %110 : i32 to index
    %c0_61 = arith.constant 0 : index
    %c0_62 = arith.constant 0 : index
    %112 = vector.load %arg1[%c0_60, %111, %c0_61, %c0_62] : memref<1x8x2x32xf32, #tpu.memory_space<vmem>>, vector<1x1x2x32xf32>
    %113 = vector.shape_cast %112 : vector<1x1x2x32xf32> to vector<2x32xf32>
    %cst_63 = arith.constant dense<0.000000e+00> : vector<2x32xf32>
    %114 = tpu.matmul %102, %1, %cst_63 {dimension_numbers = #tpu.dot_dimension_numbers<[1], [0], [0], [1], [0, 0, 1, 1], [], []>} : vector<2x32xf32>, vector<32x32xf32>, vector<2x32xf32> -> vector<2x32xf32>
    %115 = arith.addf %113, %114 : vector<2x32xf32>
    %116 = arith.negf %115 : vector<2x32xf32>
    %117 = math.exp %116 : vector<2x32xf32>
    %cst_64 = arith.constant 1.000000e+00 : f32
    %118 = vector.broadcast %cst_64 : f32 to vector<2x32xf32>
    %119 = arith.addf %118, %117 : vector<2x32xf32>
    %120 = arith.divf %118, %119 : vector<2x32xf32>
    %c0_65 = arith.constant 0 : index
    %121 = arith.index_cast %110 : i32 to index
    %c0_66 = arith.constant 0 : index
    %c0_67 = arith.constant 0 : index
    %122 = vector.load %arg2[%c0_65, %121, %c0_66, %c0_67] : memref<1x8x2x32xf32, #tpu.memory_space<vmem>>, vector<1x1x2x32xf32>
    %123 = vector.shape_cast %122 : vector<1x1x2x32xf32> to vector<2x32xf32>
    %cst_68 = arith.constant dense<0.000000e+00> : vector<2x32xf32>
    %124 = tpu.matmul %102, %3, %cst_68 {dimension_numbers = #tpu.dot_dimension_numbers<[1], [0], [0], [1], [0, 0, 1, 1], [], []>} : vector<2x32xf32>, vector<32x32xf32>, vector<2x32xf32> -> vector<2x32xf32>
    %125 = arith.addf %123, %124 : vector<2x32xf32>
    %126 = arith.negf %125 : vector<2x32xf32>
    %127 = math.exp %126 : vector<2x32xf32>
    %cst_69 = arith.constant 1.000000e+00 : f32
    %128 = vector.broadcast %cst_69 : f32 to vector<2x32xf32>
    %129 = arith.addf %128, %127 : vector<2x32xf32>
    %130 = arith.divf %128, %129 : vector<2x32xf32>
    %c0_70 = arith.constant 0 : index
    %131 = arith.index_cast %110 : i32 to index
    %c0_71 = arith.constant 0 : index
    %c0_72 = arith.constant 0 : index
    %132 = vector.load %arg3[%c0_70, %131, %c0_71, %c0_72] : memref<1x8x2x32xf32, #tpu.memory_space<vmem>>, vector<1x1x2x32xf32>
    %133 = vector.shape_cast %132 : vector<1x1x2x32xf32> to vector<2x32xf32>
    %cst_73 = arith.constant dense<0.000000e+00> : vector<2x32xf32>
    %134 = tpu.matmul %102, %5, %cst_73 {dimension_numbers = #tpu.dot_dimension_numbers<[1], [0], [0], [1], [0, 0, 1, 1], [], []>} : vector<2x32xf32>, vector<32x32xf32>, vector<2x32xf32> -> vector<2x32xf32>
    %135 = arith.addf %133, %134 : vector<2x32xf32>
    %136 = math.tanh %135 : vector<2x32xf32>
    %c0_74 = arith.constant 0 : index
    %137 = arith.index_cast %110 : i32 to index
    %c0_75 = arith.constant 0 : index
    %c0_76 = arith.constant 0 : index
    %138 = vector.load %arg4[%c0_74, %137, %c0_75, %c0_76] : memref<1x8x2x32xf32, #tpu.memory_space<vmem>>, vector<1x1x2x32xf32>
    %139 = vector.shape_cast %138 : vector<1x1x2x32xf32> to vector<2x32xf32>
    %cst_77 = arith.constant dense<0.000000e+00> : vector<2x32xf32>
    %140 = tpu.matmul %102, %7, %cst_77 {dimension_numbers = #tpu.dot_dimension_numbers<[1], [0], [0], [1], [0, 0, 1, 1], [], []>} : vector<2x32xf32>, vector<32x32xf32>, vector<2x32xf32> -> vector<2x32xf32>
    %141 = arith.addf %139, %140 : vector<2x32xf32>
    %142 = arith.negf %141 : vector<2x32xf32>
    %143 = math.exp %142 : vector<2x32xf32>
    %cst_78 = arith.constant 1.000000e+00 : f32
    %144 = vector.broadcast %cst_78 : f32 to vector<2x32xf32>
    %145 = arith.addf %144, %143 : vector<2x32xf32>
    %146 = arith.divf %144, %145 : vector<2x32xf32>
    %147 = arith.mulf %130, %100 : vector<2x32xf32>
    %148 = arith.mulf %120, %136 : vector<2x32xf32>
    %149 = arith.addf %147, %148 : vector<2x32xf32>
    %150 = math.tanh %149 : vector<2x32xf32>
    %151 = arith.mulf %146, %150 : vector<2x32xf32>
    %152 = arith.index_cast %110 : i32 to index
    %c0_79 = arith.constant 0 : index
    %c0_80 = arith.constant 0 : index
    %c0_81 = arith.constant 0 : index
    %153 = vector.load %arg9[%152, %c0_79, %c0_80, %c0_81] : memref<8x1x2x32xf32, #tpu.memory_space<vmem>>, vector<1x1x2x32xf32>
    %154 = vector.shape_cast %153 : vector<1x1x2x32xf32> to vector<2x32xf32>
    %155 = vector.shape_cast %151 : vector<2x32xf32> to vector<1x1x2x32xf32>
    tpu.vector_store %arg9[%152, %c0_79, %c0_80, %c0_81], %155 {strides = array<i32>} : memref<8x1x2x32xf32, #tpu.memory_space<vmem>>, vector<1x1x2x32xf32>,
    %c3_i32 = arith.constant 3 : i32
    %c2_i32_82 = arith.constant 2 : i32
    %156 = arith.muli %c2_i32_82, %c3_i32 : i32
    %c7_i32_83 = arith.constant 7 : i32
    %157 = arith.subi %c7_i32_83, %156 : i32
    %158 = arith.muli %arg0, %157 : i32
    %159 = arith.addi %c3_i32, %158 : i32
    %c0_84 = arith.constant 0 : index
    %160 = arith.index_cast %159 : i32 to index
    %c0_85 = arith.constant 0 : index
    %c0_86 = arith.constant 0 : index
    %161 = vector.load %arg1[%c0_84, %160, %c0_85, %c0_86] : memref<1x8x2x32xf32, #tpu.memory_space<vmem>>, vector<1x1x2x32xf32>
    %162 = vector.shape_cast %161 : vector<1x1x2x32xf32> to vector<2x32xf32>
    %cst_87 = arith.constant dense<0.000000e+00> : vector<2x32xf32>
    %163 = tpu.matmul %151, %1, %cst_87 {dimension_numbers = #tpu.dot_dimension_numbers<[1], [0], [0], [1], [0, 0, 1, 1], [], []>} : vector<2x32xf32>, vector<32x32xf32>, vector<2x32xf32> -> vector<2x32xf32>
    %164 = arith.addf %162, %163 : vector<2x32xf32>
    %165 = arith.negf %164 : vector<2x32xf32>
    %166 = math.exp %165 : vector<2x32xf32>
    %cst_88 = arith.constant 1.000000e+00 : f32
    %167 = vector.broadcast %cst_88 : f32 to vector<2x32xf32>
    %168 = arith.addf %167, %166 : vector<2x32xf32>
    %169 = arith.divf %167, %168 : vector<2x32xf32>
    %c0_89 = arith.constant 0 : index
    %170 = arith.index_cast %159 : i32 to index
    %c0_90 = arith.constant 0 : index
    %c0_91 = arith.constant 0 : index
    %171 = vector.load %arg2[%c0_89, %170, %c0_90, %c0_91] : memref<1x8x2x32xf32, #tpu.memory_space<vmem>>, vector<1x1x2x32xf32>
    %172 = vector.shape_cast %171 : vector<1x1x2x32xf32> to vector<2x32xf32>
    %cst_92 = arith.constant dense<0.000000e+00> : vector<2x32xf32>
    %173 = tpu.matmul %151, %3, %cst_92 {dimension_numbers = #tpu.dot_dimension_numbers<[1], [0], [0], [1], [0, 0, 1, 1], [], []>} : vector<2x32xf32>, vector<32x32xf32>, vector<2x32xf32> -> vector<2x32xf32>
    %174 = arith.addf %172, %173 : vector<2x32xf32>
    %175 = arith.negf %174 : vector<2x32xf32>
    %176 = math.exp %175 : vector<2x32xf32>
    %cst_93 = arith.constant 1.000000e+00 : f32
    %177 = vector.broadcast %cst_93 : f32 to vector<2x32xf32>
    %178 = arith.addf %177, %176 : vector<2x32xf32>
    %179 = arith.divf %177, %178 : vector<2x32xf32>
    %c0_94 = arith.constant 0 : index
    %180 = arith.index_cast %159 : i32 to index
    %c0_95 = arith.constant 0 : index
    %c0_96 = arith.constant 0 : index
    %181 = vector.load %arg3[%c0_94, %180, %c0_95, %c0_96] : memref<1x8x2x32xf32, #tpu.memory_space<vmem>>, vector<1x1x2x32xf32>
    %182 = vector.shape_cast %181 : vector<1x1x2x32xf32> to vector<2x32xf32>
    %cst_97 = arith.constant dense<0.000000e+00> : vector<2x32xf32>
    %183 = tpu.matmul %151, %5, %cst_97 {dimension_numbers = #tpu.dot_dimension_numbers<[1], [0], [0], [1], [0, 0, 1, 1], [], []>} : vector<2x32xf32>, vector<32x32xf32>, vector<2x32xf32> -> vector<2x32xf32>
    %184 = arith.addf %182, %183 : vector<2x32xf32>
    %185 = math.tanh %184 : vector<2x32xf32>
    %c0_98 = arith.constant 0 : index
    %186 = arith.index_cast %159 : i32 to index
    %c0_99 = arith.constant 0 : index
    %c0_100 = arith.constant 0 : index
    %187 = vector.load %arg4[%c0_98, %186, %c0_99, %c0_100] : memref<1x8x2x32xf32, #tpu.memory_space<vmem>>, vector<1x1x2x32xf32>
    %188 = vector.shape_cast %187 : vector<1x1x2x32xf32> to vector<2x32xf32>
    %cst_101 = arith.constant dense<0.000000e+00> : vector<2x32xf32>
    %189 = tpu.matmul %151, %7, %cst_101 {dimension_numbers = #tpu.dot_dimension_numbers<[1], [0], [0], [1], [0, 0, 1, 1], [], []>} : vector<2x32xf32>, vector<32x32xf32>, vector<2x32xf32> -> vector<2x32xf32>
    %190 = arith.addf %188, %189 : vector<2x32xf32>
    %191 = arith.negf %190 : vector<2x32xf32>
    %192 = math.exp %191 : vector<2x32xf32>
    %cst_102 = arith.constant 1.000000e+00 : f32
    %193 = vector.broadcast %cst_102 : f32 to vector<2x32xf32>
    %194 = arith.addf %193, %192 : vector<2x32xf32>
    %195 = arith.divf %193, %194 : vector<2x32xf32>
    %196 = arith.mulf %179, %149 : vector<2x32xf32>
    %197 = arith.mulf %169, %185 : vector<2x32xf32>
    %198 = arith.addf %196, %197 : vector<2x32xf32>
    %199 = math.tanh %198 : vector<2x32xf32>
    %200 = arith.mulf %195, %199 : vector<2x32xf32>
    %201 = arith.index_cast %159 : i32 to index
    %c0_103 = arith.constant 0 : index
    %c0_104 = arith.constant 0 : index
    %c0_105 = arith.constant 0 : index
    %202 = vector.load %arg9[%201, %c0_103, %c0_104, %c0_105] : memref<8x1x2x32xf32, #tpu.memory_space<vmem>>, vector<1x1x2x32xf32>
    %203 = vector.shape_cast %202 : vector<1x1x2x32xf32> to vector<2x32xf32>
    %204 = vector.shape_cast %200 : vector<2x32xf32> to vector<1x1x2x32xf32>
    tpu.vector_store %arg9[%201, %c0_103, %c0_104, %c0_105], %204 {strides = array<i32>} : memref<8x1x2x32xf32, #tpu.memory_space<vmem>>, vector<1x1x2x32xf32>,
    %c4_i32 = arith.constant 4 : i32
    %c2_i32_106 = arith.constant 2 : i32
    %205 = arith.muli %c2_i32_106, %c4_i32 : i32
    %c7_i32_107 = arith.constant 7 : i32
    %206 = arith.subi %c7_i32_107, %205 : i32
    %207 = arith.muli %arg0, %206 : i32
    %208 = arith.addi %c4_i32, %207 : i32
    %c0_108 = arith.constant 0 : index
    %209 = arith.index_cast %208 : i32 to index
    %c0_109 = arith.constant 0 : index
    %c0_110 = arith.constant 0 : index
    %210 = vector.load %arg1[%c0_108, %209, %c0_109, %c0_110] : memref<1x8x2x32xf32, #tpu.memory_space<vmem>>, vector<1x1x2x32xf32>
    %211 = vector.shape_cast %210 : vector<1x1x2x32xf32> to vector<2x32xf32>
    %cst_111 = arith.constant dense<0.000000e+00> : vector<2x32xf32>
    %212 = tpu.matmul %200, %1, %cst_111 {dimension_numbers = #tpu.dot_dimension_numbers<[1], [0], [0], [1], [0, 0, 1, 1], [], []>} : vector<2x32xf32>, vector<32x32xf32>, vector<2x32xf32> -> vector<2x32xf32>
    %213 = arith.addf %211, %212 : vector<2x32xf32>
    %214 = arith.negf %213 : vector<2x32xf32>
    %215 = math.exp %214 : vector<2x32xf32>
    %cst_112 = arith.constant 1.000000e+00 : f32
    %216 = vector.broadcast %cst_112 : f32 to vector<2x32xf32>
    %217 = arith.addf %216, %215 : vector<2x32xf32>
    %218 = arith.divf %216, %217 : vector<2x32xf32>
    %c0_113 = arith.constant 0 : index
    %219 = arith.index_cast %208 : i32 to index
    %c0_114 = arith.constant 0 : index
    %c0_115 = arith.constant 0 : index
    %220 = vector.load %arg2[%c0_113, %219, %c0_114, %c0_115] : memref<1x8x2x32xf32, #tpu.memory_space<vmem>>, vector<1x1x2x32xf32>
    %221 = vector.shape_cast %220 : vector<1x1x2x32xf32> to vector<2x32xf32>
    %cst_116 = arith.constant dense<0.000000e+00> : vector<2x32xf32>
    %222 = tpu.matmul %200, %3, %cst_116 {dimension_numbers = #tpu.dot_dimension_numbers<[1], [0], [0], [1], [0, 0, 1, 1], [], []>} : vector<2x32xf32>, vector<32x32xf32>, vector<2x32xf32> -> vector<2x32xf32>
    %223 = arith.addf %221, %222 : vector<2x32xf32>
    %224 = arith.negf %223 : vector<2x32xf32>
    %225 = math.exp %224 : vector<2x32xf32>
    %cst_117 = arith.constant 1.000000e+00 : f32
    %226 = vector.broadcast %cst_117 : f32 to vector<2x32xf32>
    %227 = arith.addf %226, %225 : vector<2x32xf32>
    %228 = arith.divf %226, %227 : vector<2x32xf32>
    %c0_118 = arith.constant 0 : index
    %229 = arith.index_cast %208 : i32 to index
    %c0_119 = arith.constant 0 : index
    %c0_120 = arith.constant 0 : index
    %230 = vector.load %arg3[%c0_118, %229, %c0_119, %c0_120] : memref<1x8x2x32xf32, #tpu.memory_space<vmem>>, vector<1x1x2x32xf32>
    %231 = vector.shape_cast %230 : vector<1x1x2x32xf32> to vector<2x32xf32>
    %cst_121 = arith.constant dense<0.000000e+00> : vector<2x32xf32>
    %232 = tpu.matmul %200, %5, %cst_121 {dimension_numbers = #tpu.dot_dimension_numbers<[1], [0], [0], [1], [0, 0, 1, 1], [], []>} : vector<2x32xf32>, vector<32x32xf32>, vector<2x32xf32> -> vector<2x32xf32>
    %233 = arith.addf %231, %232 : vector<2x32xf32>
    %234 = math.tanh %233 : vector<2x32xf32>
    %c0_122 = arith.constant 0 : index
    %235 = arith.index_cast %208 : i32 to index
    %c0_123 = arith.constant 0 : index
    %c0_124 = arith.constant 0 : index
    %236 = vector.load %arg4[%c0_122, %235, %c0_123, %c0_124] : memref<1x8x2x32xf32, #tpu.memory_space<vmem>>, vector<1x1x2x32xf32>
    %237 = vector.shape_cast %236 : vector<1x1x2x32xf32> to vector<2x32xf32>
    %cst_125 = arith.constant dense<0.000000e+00> : vector<2x32xf32>
    %238 = tpu.matmul %200, %7, %cst_125 {dimension_numbers = #tpu.dot_dimension_numbers<[1], [0], [0], [1], [0, 0, 1, 1], [], []>} : vector<2x32xf32>, vector<32x32xf32>, vector<2x32xf32> -> vector<2x32xf32>
    %239 = arith.addf %237, %238 : vector<2x32xf32>
    %240 = arith.negf %239 : vector<2x32xf32>
    %241 = math.exp %240 : vector<2x32xf32>
    %cst_126 = arith.constant 1.000000e+00 : f32
    %242 = vector.broadcast %cst_126 : f32 to vector<2x32xf32>
    %243 = arith.addf %242, %241 : vector<2x32xf32>
    %244 = arith.divf %242, %243 : vector<2x32xf32>
    %245 = arith.mulf %228, %198 : vector<2x32xf32>
    %246 = arith.mulf %218, %234 : vector<2x32xf32>
    %247 = arith.addf %245, %246 : vector<2x32xf32>
    %248 = math.tanh %247 : vector<2x32xf32>
    %249 = arith.mulf %244, %248 : vector<2x32xf32>
    %250 = arith.index_cast %208 : i32 to index
    %c0_127 = arith.constant 0 : index
    %c0_128 = arith.constant 0 : index
    %c0_129 = arith.constant 0 : index
    %251 = vector.load %arg9[%250, %c0_127, %c0_128, %c0_129] : memref<8x1x2x32xf32, #tpu.memory_space<vmem>>, vector<1x1x2x32xf32>
    %252 = vector.shape_cast %251 : vector<1x1x2x32xf32> to vector<2x32xf32>
    %253 = vector.shape_cast %249 : vector<2x32xf32> to vector<1x1x2x32xf32>
    tpu.vector_store %arg9[%250, %c0_127, %c0_128, %c0_129], %253 {strides = array<i32>} : memref<8x1x2x32xf32, #tpu.memory_space<vmem>>, vector<1x1x2x32xf32>,
    %c5_i32 = arith.constant 5 : i32
    %c2_i32_130 = arith.constant 2 : i32
    %254 = arith.muli %c2_i32_130, %c5_i32 : i32
    %c7_i32_131 = arith.constant 7 : i32
    %255 = arith.subi %c7_i32_131, %254 : i32
    %256 = arith.muli %arg0, %255 : i32
    %257 = arith.addi %c5_i32, %256 : i32
    %c0_132 = arith.constant 0 : index
    %258 = arith.index_cast %257 : i32 to index
    %c0_133 = arith.constant 0 : index
    %c0_134 = arith.constant 0 : index
    %259 = vector.load %arg1[%c0_132, %258, %c0_133, %c0_134] : memref<1x8x2x32xf32, #tpu.memory_space<vmem>>, vector<1x1x2x32xf32>
    %260 = vector.shape_cast %259 : vector<1x1x2x32xf32> to vector<2x32xf32>
    %cst_135 = arith.constant dense<0.000000e+00> : vector<2x32xf32>
    %261 = tpu.matmul %249, %1, %cst_135 {dimension_numbers = #tpu.dot_dimension_numbers<[1], [0], [0], [1], [0, 0, 1, 1], [], []>} : vector<2x32xf32>, vector<32x32xf32>, vector<2x32xf32> -> vector<2x32xf32>
    %262 = arith.addf %260, %261 : vector<2x32xf32>
    %263 = arith.negf %262 : vector<2x32xf32>
    %264 = math.exp %263 : vector<2x32xf32>
    %cst_136 = arith.constant 1.000000e+00 : f32
    %265 = vector.broadcast %cst_136 : f32 to vector<2x32xf32>
    %266 = arith.addf %265, %264 : vector<2x32xf32>
    %267 = arith.divf %265, %266 : vector<2x32xf32>
    %c0_137 = arith.constant 0 : index
    %268 = arith.index_cast %257 : i32 to index
    %c0_138 = arith.constant 0 : index
    %c0_139 = arith.constant 0 : index
    %269 = vector.load %arg2[%c0_137, %268, %c0_138, %c0_139] : memref<1x8x2x32xf32, #tpu.memory_space<vmem>>, vector<1x1x2x32xf32>
    %270 = vector.shape_cast %269 : vector<1x1x2x32xf32> to vector<2x32xf32>
    %cst_140 = arith.constant dense<0.000000e+00> : vector<2x32xf32>
    %271 = tpu.matmul %249, %3, %cst_140 {dimension_numbers = #tpu.dot_dimension_numbers<[1], [0], [0], [1], [0, 0, 1, 1], [], []>} : vector<2x32xf32>, vector<32x32xf32>, vector<2x32xf32> -> vector<2x32xf32>
    %272 = arith.addf %270, %271 : vector<2x32xf32>
    %273 = arith.negf %272 : vector<2x32xf32>
    %274 = math.exp %273 : vector<2x32xf32>
    %cst_141 = arith.constant 1.000000e+00 : f32
    %275 = vector.broadcast %cst_141 : f32 to vector<2x32xf32>
    %276 = arith.addf %275, %274 : vector<2x32xf32>
    %277 = arith.divf %275, %276 : vector<2x32xf32>
    %c0_142 = arith.constant 0 : index
    %278 = arith.index_cast %257 : i32 to index
    %c0_143 = arith.constant 0 : index
    %c0_144 = arith.constant 0 : index
    %279 = vector.load %arg3[%c0_142, %278, %c0_143, %c0_144] : memref<1x8x2x32xf32, #tpu.memory_space<vmem>>, vector<1x1x2x32xf32>
    %280 = vector.shape_cast %279 : vector<1x1x2x32xf32> to vector<2x32xf32>
    %cst_145 = arith.constant dense<0.000000e+00> : vector<2x32xf32>
    %281 = tpu.matmul %249, %5, %cst_145 {dimension_numbers = #tpu.dot_dimension_numbers<[1], [0], [0], [1], [0, 0, 1, 1], [], []>} : vector<2x32xf32>, vector<32x32xf32>, vector<2x32xf32> -> vector<2x32xf32>
    %282 = arith.addf %280, %281 : vector<2x32xf32>
    %283 = math.tanh %282 : vector<2x32xf32>
    %c0_146 = arith.constant 0 : index
    %284 = arith.index_cast %257 : i32 to index
    %c0_147 = arith.constant 0 : index
    %c0_148 = arith.constant 0 : index
    %285 = vector.load %arg4[%c0_146, %284, %c0_147, %c0_148] : memref<1x8x2x32xf32, #tpu.memory_space<vmem>>, vector<1x1x2x32xf32>
    %286 = vector.shape_cast %285 : vector<1x1x2x32xf32> to vector<2x32xf32>
    %cst_149 = arith.constant dense<0.000000e+00> : vector<2x32xf32>
    %287 = tpu.matmul %249, %7, %cst_149 {dimension_numbers = #tpu.dot_dimension_numbers<[1], [0], [0], [1], [0, 0, 1, 1], [], []>} : vector<2x32xf32>, vector<32x32xf32>, vector<2x32xf32> -> vector<2x32xf32>
    %288 = arith.addf %286, %287 : vector<2x32xf32>
    %289 = arith.negf %288 : vector<2x32xf32>
    %290 = math.exp %289 : vector<2x32xf32>
    %cst_150 = arith.constant 1.000000e+00 : f32
    %291 = vector.broadcast %cst_150 : f32 to vector<2x32xf32>
    %292 = arith.addf %291, %290 : vector<2x32xf32>
    %293 = arith.divf %291, %292 : vector<2x32xf32>
    %294 = arith.mulf %277, %247 : vector<2x32xf32>
    %295 = arith.mulf %267, %283 : vector<2x32xf32>
    %296 = arith.addf %294, %295 : vector<2x32xf32>
    %297 = math.tanh %296 : vector<2x32xf32>
    %298 = arith.mulf %293, %297 : vector<2x32xf32>
    %299 = arith.index_cast %257 : i32 to index
    %c0_151 = arith.constant 0 : index
    %c0_152 = arith.constant 0 : index
    %c0_153 = arith.constant 0 : index
    %300 = vector.load %arg9[%299, %c0_151, %c0_152, %c0_153] : memref<8x1x2x32xf32, #tpu.memory_space<vmem>>, vector<1x1x2x32xf32>
    %301 = vector.shape_cast %300 : vector<1x1x2x32xf32> to vector<2x32xf32>
    %302 = vector.shape_cast %298 : vector<2x32xf32> to vector<1x1x2x32xf32>
    tpu.vector_store %arg9[%299, %c0_151, %c0_152, %c0_153], %302 {strides = array<i32>} : memref<8x1x2x32xf32, #tpu.memory_space<vmem>>, vector<1x1x2x32xf32>,
    %c6_i32 = arith.constant 6 : i32
    %c2_i32_154 = arith.constant 2 : i32
    %303 = arith.muli %c2_i32_154, %c6_i32 : i32
    %c7_i32_155 = arith.constant 7 : i32
    %304 = arith.subi %c7_i32_155, %303 : i32
    %305 = arith.muli %arg0, %304 : i32
    %306 = arith.addi %c6_i32, %305 : i32
    %c0_156 = arith.constant 0 : index
    %307 = arith.index_cast %306 : i32 to index
    %c0_157 = arith.constant 0 : index
    %c0_158 = arith.constant 0 : index
    %308 = vector.load %arg1[%c0_156, %307, %c0_157, %c0_158] : memref<1x8x2x32xf32, #tpu.memory_space<vmem>>, vector<1x1x2x32xf32>
    %309 = vector.shape_cast %308 : vector<1x1x2x32xf32> to vector<2x32xf32>
    %cst_159 = arith.constant dense<0.000000e+00> : vector<2x32xf32>
    %310 = tpu.matmul %298, %1, %cst_159 {dimension_numbers = #tpu.dot_dimension_numbers<[1], [0], [0], [1], [0, 0, 1, 1], [], []>} : vector<2x32xf32>, vector<32x32xf32>, vector<2x32xf32> -> vector<2x32xf32>
    %311 = arith.addf %309, %310 : vector<2x32xf32>
    %312 = arith.negf %311 : vector<2x32xf32>
    %313 = math.exp %312 : vector<2x32xf32>
    %cst_160 = arith.constant 1.000000e+00 : f32
    %314 = vector.broadcast %cst_160 : f32 to vector<2x32xf32>
    %315 = arith.addf %314, %313 : vector<2x32xf32>
    %316 = arith.divf %314, %315 : vector<2x32xf32>
    %c0_161 = arith.constant 0 : index
    %317 = arith.index_cast %306 : i32 to index
    %c0_162 = arith.constant 0 : index
    %c0_163 = arith.constant 0 : index
    %318 = vector.load %arg2[%c0_161, %317, %c0_162, %c0_163] : memref<1x8x2x32xf32, #tpu.memory_space<vmem>>, vector<1x1x2x32xf32>
    %319 = vector.shape_cast %318 : vector<1x1x2x32xf32> to vector<2x32xf32>
    %cst_164 = arith.constant dense<0.000000e+00> : vector<2x32xf32>
    %320 = tpu.matmul %298, %3, %cst_164 {dimension_numbers = #tpu.dot_dimension_numbers<[1], [0], [0], [1], [0, 0, 1, 1], [], []>} : vector<2x32xf32>, vector<32x32xf32>, vector<2x32xf32> -> vector<2x32xf32>
    %321 = arith.addf %319, %320 : vector<2x32xf32>
    %322 = arith.negf %321 : vector<2x32xf32>
    %323 = math.exp %322 : vector<2x32xf32>
    %cst_165 = arith.constant 1.000000e+00 : f32
    %324 = vector.broadcast %cst_165 : f32 to vector<2x32xf32>
    %325 = arith.addf %324, %323 : vector<2x32xf32>
    %326 = arith.divf %324, %325 : vector<2x32xf32>
    %c0_166 = arith.constant 0 : index
    %327 = arith.index_cast %306 : i32 to index
    %c0_167 = arith.constant 0 : index
    %c0_168 = arith.constant 0 : index
    %328 = vector.load %arg3[%c0_166, %327, %c0_167, %c0_168] : memref<1x8x2x32xf32, #tpu.memory_space<vmem>>, vector<1x1x2x32xf32>
    %329 = vector.shape_cast %328 : vector<1x1x2x32xf32> to vector<2x32xf32>
    %cst_169 = arith.constant dense<0.000000e+00> : vector<2x32xf32>
    %330 = tpu.matmul %298, %5, %cst_169 {dimension_numbers = #tpu.dot_dimension_numbers<[1], [0], [0], [1], [0, 0, 1, 1], [], []>} : vector<2x32xf32>, vector<32x32xf32>, vector<2x32xf32> -> vector<2x32xf32>
    %331 = arith.addf %329, %330 : vector<2x32xf32>
    %332 = math.tanh %331 : vector<2x32xf32>
    %c0_170 = arith.constant 0 : index
    %333 = arith.index_cast %306 : i32 to index
    %c0_171 = arith.constant 0 : index
    %c0_172 = arith.constant 0 : index
    %334 = vector.load %arg4[%c0_170, %333, %c0_171, %c0_172] : memref<1x8x2x32xf32, #tpu.memory_space<vmem>>, vector<1x1x2x32xf32>
    %335 = vector.shape_cast %334 : vector<1x1x2x32xf32> to vector<2x32xf32>
    %cst_173 = arith.constant dense<0.000000e+00> : vector<2x32xf32>
    %336 = tpu.matmul %298, %7, %cst_173 {dimension_numbers = #tpu.dot_dimension_numbers<[1], [0], [0], [1], [0, 0, 1, 1], [], []>} : vector<2x32xf32>, vector<32x32xf32>, vector<2x32xf32> -> vector<2x32xf32>
    %337 = arith.addf %335, %336 : vector<2x32xf32>
    %338 = arith.negf %337 : vector<2x32xf32>
    %339 = math.exp %338 : vector<2x32xf32>
    %cst_174 = arith.constant 1.000000e+00 : f32
    %340 = vector.broadcast %cst_174 : f32 to vector<2x32xf32>
    %341 = arith.addf %340, %339 : vector<2x32xf32>
    %342 = arith.divf %340, %341 : vector<2x32xf32>
    %343 = arith.mulf %326, %296 : vector<2x32xf32>
    %344 = arith.mulf %316, %332 : vector<2x32xf32>
    %345 = arith.addf %343, %344 : vector<2x32xf32>
    %346 = math.tanh %345 : vector<2x32xf32>
    %347 = arith.mulf %342, %346 : vector<2x32xf32>
    %348 = arith.index_cast %306 : i32 to index
    %c0_175 = arith.constant 0 : index
    %c0_176 = arith.constant 0 : index
    %c0_177 = arith.constant 0 : index
    %349 = vector.load %arg9[%348, %c0_175, %c0_176, %c0_177] : memref<8x1x2x32xf32, #tpu.memory_space<vmem>>, vector<1x1x2x32xf32>
    %350 = vector.shape_cast %349 : vector<1x1x2x32xf32> to vector<2x32xf32>
    %351 = vector.shape_cast %347 : vector<2x32xf32> to vector<1x1x2x32xf32>
    tpu.vector_store %arg9[%348, %c0_175, %c0_176, %c0_177], %351 {strides = array<i32>} : memref<8x1x2x32xf32, #tpu.memory_space<vmem>>, vector<1x1x2x32xf32>,
    %c7_i32_178 = arith.constant 7 : i32
    %c2_i32_179 = arith.constant 2 : i32
    %352 = arith.muli %c2_i32_179, %c7_i32_178 : i32
    %c7_i32_180 = arith.constant 7 : i32
    %353 = arith.subi %c7_i32_180, %352 : i32
    %354 = arith.muli %arg0, %353 : i32
    %355 = arith.addi %c7_i32_178, %354 : i32
    %c0_181 = arith.constant 0 : index
    %356 = arith.index_cast %355 : i32 to index
    %c0_182 = arith.constant 0 : index
    %c0_183 = arith.constant 0 : index
    %357 = vector.load %arg1[%c0_181, %356, %c0_182, %c0_183] : memref<1x8x2x32xf32, #tpu.memory_space<vmem>>, vector<1x1x2x32xf32>
    %358 = vector.shape_cast %357 : vector<1x1x2x32xf32> to vector<2x32xf32>
    %cst_184 = arith.constant dense<0.000000e+00> : vector<2x32xf32>
    %359 = tpu.matmul %347, %1, %cst_184 {dimension_numbers = #tpu.dot_dimension_numbers<[1], [0], [0], [1], [0, 0, 1, 1], [], []>} : vector<2x32xf32>, vector<32x32xf32>, vector<2x32xf32> -> vector<2x32xf32>
    %360 = arith.addf %358, %359 : vector<2x32xf32>
    %361 = arith.negf %360 : vector<2x32xf32>
    %362 = math.exp %361 : vector<2x32xf32>
    %cst_185 = arith.constant 1.000000e+00 : f32
    %363 = vector.broadcast %cst_185 : f32 to vector<2x32xf32>
    %364 = arith.addf %363, %362 : vector<2x32xf32>
    %365 = arith.divf %363, %364 : vector<2x32xf32>
    %c0_186 = arith.constant 0 : index
    %366 = arith.index_cast %355 : i32 to index
    %c0_187 = arith.constant 0 : index
    %c0_188 = arith.constant 0 : index
    %367 = vector.load %arg2[%c0_186, %366, %c0_187, %c0_188] : memref<1x8x2x32xf32, #tpu.memory_space<vmem>>, vector<1x1x2x32xf32>
    %368 = vector.shape_cast %367 : vector<1x1x2x32xf32> to vector<2x32xf32>
    %cst_189 = arith.constant dense<0.000000e+00> : vector<2x32xf32>
    %369 = tpu.matmul %347, %3, %cst_189 {dimension_numbers = #tpu.dot_dimension_numbers<[1], [0], [0], [1], [0, 0, 1, 1], [], []>} : vector<2x32xf32>, vector<32x32xf32>, vector<2x32xf32> -> vector<2x32xf32>
    %370 = arith.addf %368, %369 : vector<2x32xf32>
    %371 = arith.negf %370 : vector<2x32xf32>
    %372 = math.exp %371 : vector<2x32xf32>
    %cst_190 = arith.constant 1.000000e+00 : f32
    %373 = vector.broadcast %cst_190 : f32 to vector<2x32xf32>
    %374 = arith.addf %373, %372 : vector<2x32xf32>
    %375 = arith.divf %373, %374 : vector<2x32xf32>
    %c0_191 = arith.constant 0 : index
    %376 = arith.index_cast %355 : i32 to index
    %c0_192 = arith.constant 0 : index
    %c0_193 = arith.constant 0 : index
    %377 = vector.load %arg3[%c0_191, %376, %c0_192, %c0_193] : memref<1x8x2x32xf32, #tpu.memory_space<vmem>>, vector<1x1x2x32xf32>
    %378 = vector.shape_cast %377 : vector<1x1x2x32xf32> to vector<2x32xf32>
    %cst_194 = arith.constant dense<0.000000e+00> : vector<2x32xf32>
    %379 = tpu.matmul %347, %5, %cst_194 {dimension_numbers = #tpu.dot_dimension_numbers<[1], [0], [0], [1], [0, 0, 1, 1], [], []>} : vector<2x32xf32>, vector<32x32xf32>, vector<2x32xf32> -> vector<2x32xf32>
    %380 = arith.addf %378, %379 : vector<2x32xf32>
    %381 = math.tanh %380 : vector<2x32xf32>
    %c0_195 = arith.constant 0 : index
    %382 = arith.index_cast %355 : i32 to index
    %c0_196 = arith.constant 0 : index
    %c0_197 = arith.constant 0 : index
    %383 = vector.load %arg4[%c0_195, %382, %c0_196, %c0_197] : memref<1x8x2x32xf32, #tpu.memory_space<vmem>>, vector<1x1x2x32xf32>
    %384 = vector.shape_cast %383 : vector<1x1x2x32xf32> to vector<2x32xf32>
    %cst_198 = arith.constant dense<0.000000e+00> : vector<2x32xf32>
    %385 = tpu.matmul %347, %7, %cst_198 {dimension_numbers = #tpu.dot_dimension_numbers<[1], [0], [0], [1], [0, 0, 1, 1], [], []>} : vector<2x32xf32>, vector<32x32xf32>, vector<2x32xf32> -> vector<2x32xf32>
    %386 = arith.addf %384, %385 : vector<2x32xf32>
    %387 = arith.negf %386 : vector<2x32xf32>
    %388 = math.exp %387 : vector<2x32xf32>
    %cst_199 = arith.constant 1.000000e+00 : f32
    %389 = vector.broadcast %cst_199 : f32 to vector<2x32xf32>
    %390 = arith.addf %389, %388 : vector<2x32xf32>
    %391 = arith.divf %389, %390 : vector<2x32xf32>
    %392 = arith.mulf %375, %345 : vector<2x32xf32>
    %393 = arith.mulf %365, %381 : vector<2x32xf32>
    %394 = arith.addf %392, %393 : vector<2x32xf32>
    %395 = math.tanh %394 : vector<2x32xf32>
    %396 = arith.mulf %391, %395 : vector<2x32xf32>
    %397 = arith.index_cast %355 : i32 to index
    %c0_200 = arith.constant 0 : index
    %c0_201 = arith.constant 0 : index
    %c0_202 = arith.constant 0 : index
    %398 = vector.load %arg9[%397, %c0_200, %c0_201, %c0_202] : memref<8x1x2x32xf32, #tpu.memory_space<vmem>>, vector<1x1x2x32xf32>
    %399 = vector.shape_cast %398 : vector<1x1x2x32xf32> to vector<2x32xf32>
    %400 = vector.shape_cast %396 : vector<2x32xf32> to vector<1x1x2x32xf32>
    tpu.vector_store %arg9[%397, %c0_200, %c0_201, %c0_202], %400 {strides = array<i32>} : memref<8x1x2x32xf32, #tpu.memory_space<vmem>>, vector<1x1x2x32xf32>,
    %c8_i32 = arith.constant 8 : i32
    return
  }
  func.func @transform_0(%arg0: i32) -> (i32, i32, i32, i32) {
    %c0_i32 = arith.constant 0 : i32
    %c0_i32_0 = arith.constant 0 : i32
    %c0_i32_1 = arith.constant 0 : i32
    %c0_i32_2 = arith.constant 0 : i32
    return %arg0, %c0_i32, %c0_i32_0, %c0_i32_1 : i32, i32, i32, i32
  }
  func.func @transform_1(%arg0: i32) -> (i32, i32, i32, i32) {
    %c0_i32 = arith.constant 0 : i32
    %c0_i32_0 = arith.constant 0 : i32
    %c0_i32_1 = arith.constant 0 : i32
    %c0_i32_2 = arith.constant 0 : i32
    return %arg0, %c0_i32, %c0_i32_0, %c0_i32_1 : i32, i32, i32, i32
  }
  func.func @transform_2(%arg0: i32) -> (i32, i32, i32, i32) {
    %c0_i32 = arith.constant 0 : i32
    %c0_i32_0 = arith.constant 0 : i32
    %c0_i32_1 = arith.constant 0 : i32
    %c0_i32_2 = arith.constant 0 : i32
    return %arg0, %c0_i32, %c0_i32_0, %c0_i32_1 : i32, i32, i32, i32
  }
  func.func @transform_3(%arg0: i32) -> (i32, i32, i32, i32) {
    %c0_i32 = arith.constant 0 : i32
    %c0_i32_0 = arith.constant 0 : i32
    %c0_i32_1 = arith.constant 0 : i32
    %c0_i32_2 = arith.constant 0 : i32
    return %arg0, %c0_i32, %c0_i32_0, %c0_i32_1 : i32, i32, i32, i32
  }
  func.func @transform_4(%arg0: i32) -> (i32, i32, i32) {
    %c0_i32 = arith.constant 0 : i32
    %c0_i32_0 = arith.constant 0 : i32
    %c0_i32_1 = arith.constant 0 : i32
    return %arg0, %c0_i32, %c0_i32_0 : i32, i32, i32
  }
  func.func @transform_5(%arg0: i32) -> (i32, i32, i32) {
    %c0_i32 = arith.constant 0 : i32
    %c0_i32_0 = arith.constant 0 : i32
    %c0_i32_1 = arith.constant 0 : i32
    return %arg0, %c0_i32, %c0_i32_0 : i32, i32, i32
  }
  func.func @transform_6(%arg0: i32) -> (i32, i32, i32) {
    %c0_i32 = arith.constant 0 : i32
    %c0_i32_0 = arith.constant 0 : i32
    %c0_i32_1 = arith.constant 0 : i32
    return %arg0, %c0_i32, %c0_i32_0 : i32, i32, i32
  }
  func.func @transform_7(%arg0: i32) -> (i32, i32, i32) {
    %c0_i32 = arith.constant 0 : i32
    %c0_i32_0 = arith.constant 0 : i32
    %c0_i32_1 = arith.constant 0 : i32
    return %arg0, %c0_i32, %c0_i32_0 : i32, i32, i32
  }
  func.func @transform_8(%arg0: i32) -> (i32, i32, i32, i32) {
    %c0_i32 = arith.constant 0 : i32
    %c0_i32_0 = arith.constant 0 : i32
    %c0_i32_1 = arith.constant 0 : i32
    %c0_i32_2 = arith.constant 0 : i32
    return %c0_i32, %arg0, %c0_i32_0, %c0_i32_1 : i32, i32, i32, i32
  }
}

</mosaic_0001>

<llo_original>
// kernel: text_rnn_forward.2
$region0: #{text_rnn_forward.2}
  #allocation0 [shape = 'u32[]', space=smem, size = 0x4, offset = 0x4, fixed_abs, tag = 'smem constant byte address 0x4 - core index']
  #allocation1 [shape = 'u32[72,128]{1,0:T(1,128)}', space=vmem, size = 0x9000, scoped, tag = 'internal scratch']
  %s0 = inlined_call_operand.vmem [shape: f32[2,8,2,32], index: 0, kind: input, shape index: {}]
  %s1 = inlined_call_operand.vmem [shape: f32[2,8,2,32], index: 1, kind: input, shape index: {}]
  %s2 = inlined_call_operand.vmem [shape: f32[2,8,2,32], index: 2, kind: input, shape index: {}]
  %s3 = inlined_call_operand.vmem [shape: f32[2,8,2,32], index: 3, kind: input, shape index: {}]
  %s4 = inlined_call_operand.vmem [shape: f32[2,32,32], index: 4, kind: input, shape index: {}]
  %s5 = inlined_call_operand.vmem [shape: f32[2,32,32], index: 5, kind: input, shape index: {}]
  %s6 = inlined_call_operand.vmem [shape: f32[2,32,32], index: 6, kind: input, shape index: {}]
  %s7 = inlined_call_operand.vmem [shape: f32[2,32,32], index: 7, kind: input, shape index: {}]
  %s8 = inlined_call_operand.vmem [shape: f32[8,2,2,32], index: 8, kind: output, shape index: {}]
  %s9 = sld [smem:[#allocation0]]
  $region102: #{text_rnn_forward.2} parent=0
    _
  %s11 = ssub.s32 1, %s9
  %s12 = scalar_select 0, %s11, %s9
  $region1: #{text_rnn_forward.2} parent=0
    #allocation2 [shape = 'u8[16384]{0}', space=vmem, size = 0x4000, scoped, tag = 'output window, operand 0']
    loop: start=0, step=1, limit=4
    $region2: #{text_rnn_forward.2} parent=1 // loop_pre_header
      _
    $region3: #{text_rnn_forward.2} parent=1 // loop_header
      %s14 = sphi 0, %s18
      %p15 = scmp.ge.s32.totalorder %s14, 4
      %s24 = sphi 0, %s26
      %s27 = sphi 0, %s24
      %s28 = sphi 0, %s27
      %s44 = sphi 0, %s28
      %s50 = sphi 0, %s52
      %s53 = sphi 0, %s50
      %s54 = sphi 0, %s53
      %s70 = sphi 0, %s54
      %s76 = sphi 0, %s78
      %s79 = sphi 0, %s76
      %s80 = sphi 0, %s79
      %s96 = sphi 0, %s80
      %s102 = sphi 0, %s104
      %s105 = sphi 0, %s102
      %s106 = sphi 0, %s105
      %s122 = sphi 0, %s106
      %s128 = sphi 0, %s130
      %s131 = sphi 0, %s128
      %s132 = sphi 0, %s131
      %s148 = sphi 0, %s132
      %s154 = sphi 0, %s156
      %s157 = sphi 0, %s154
      %s158 = sphi 0, %s157
      %s174 = sphi 0, %s158
      %s180 = sphi 0, %s182
      %s183 = sphi 0, %s180
      %s184 = sphi 0, %s183
      %s200 = sphi 0, %s184
      %s206 = sphi 0, %s208
      %s209 = sphi 0, %s206
      %s210 = sphi 0, %s209
      %s226 = sphi 0, %s210
      %s232 = sphi 0, %s234
      %s235 = sphi 0, %s232
      %s236 = sphi 0, %s235
      %s252 = sphi 0, %s236
    $region4: #{text_rnn_forward.2} parent=1 // loop_header_branch
      %17 = sbr.rel (%p15) target = $region8
    $region5: #{text_rnn_forward.2} parent=1 // loop_body
      %s19 = ssub.s32 %s14, 1
      %s20 = ssub.s32 %s14, 2
      %s21 = sadd.s32 %s14, 1
      %s22 = ssub.s32 %s14, %s21
      %p23 = scmp.eq.s32.totalorder %s22, 0
      %s25 = sadd.s32 %s24, 1
      %s26 = scalar_select %p23, %s24, %s25
      %p29 = pneg %p23
      %p30 = scmp.eq.s32.totalorder %s14, 1
      %p31 = por %p29, %p30
      %p32 = scmp.ne.s32.totalorder %s24, %s27
      %p33 = scmp.eq.s32.totalorder %s14, 0
      %p34 = por %p32, %p33
      %p35 = scmp.ne.s32.totalorder %s24, %s27
      %p36 = scmp.eq.s32.totalorder %s19, 1
      %p37 = por %p35, %p36
      %p38 = scmp.ne.s32.totalorder %s27, %s28
      %p39 = scmp.eq.s32.totalorder %s19, 0
      %p40 = por %p38, %p39
      %p41 = scmp.ne.s32.totalorder %s27, %s28
      %p42 = scmp.eq.s32.totalorder %s20, 1
      %p43 = por %p41, %p42
      %p45 = scmp.ne.s32.totalorder %s28, %s44
      %p46 = scmp.eq.s32.totalorder %s20, 0
      %p47 = por %p45, %p46
      %s48 = ssub.s32 %s14, %s21
      %p49 = scmp.eq.s32.totalorder %s48, 0
      %s51 = sadd.s32 %s50, 1
      %s52 = scalar_select %p49, %s50, %s51
      %p55 = pneg %p49
      %p56 = scmp.eq.s32.totalorder %s14, 1
      %p57 = por %p55, %p56
      %p58 = scmp.ne.s32.totalorder %s50, %s53
      %p59 = scmp.eq.s32.totalorder %s14, 0
      %p60 = por %p58, %p59
      %p61 = scmp.ne.s32.totalorder %s50, %s53
      %p62 = scmp.eq.s32.totalorder %s19, 1
      %p63 = por %p61, %p62
      %p64 = scmp.ne.s32.totalorder %s53, %s54
      %p65 = scmp.eq.s32.totalorder %s19, 0
      %p66 = por %p64, %p65
      %p67 = scmp.ne.s32.totalorder %s53, %s54
      %p68 = scmp.eq.s32.totalorder %s20, 1
      %p69 = por %p67, %p68
      %p71 = scmp.ne.s32.totalorder %s54, %s70
      %p72 = scmp.eq.s32.totalorder %s20, 0
      %p73 = por %p71, %p72
      %s74 = ssub.s32 %s14, %s21
      %p75 = scmp.eq.s32.totalorder %s74, 0
      %s77 = sadd.s32 %s76, 1
      %s78 = scalar_select %p75, %s76, %s77
      %p81 = pneg %p75
      %p82 = scmp.eq.s32.totalorder %s14, 1
      %p83 = por %p81, %p82
      %p84 = scmp.ne.s32.totalorder %s76, %s79
      %p85 = scmp.eq.s32.totalorder %s14, 0
      %p86 = por %p84, %p85
      %p87 = scmp.ne.s32.totalorder %s76, %s79
      %p88 = scmp.eq.s32.totalorder %s19, 1
      %p89 = por %p87, %p88
      %p90 = scmp.ne.s32.totalorder %s79, %s80
      %p91 = scmp.eq.s32.totalorder %s19, 0
      %p92 = por %p90, %p91
      %p93 = scmp.ne.s32.totalorder %s79, %s80
      %p94 = scmp.eq.s32.totalorder %s20, 1
      %p95 = por %p93, %p94
      %p97 = scmp.ne.s32.totalorder %s80, %s96
      %p98 = scmp.eq.s32.totalorder %s20, 0
      %p99 = por %p97, %p98
      %s100 = ssub.s32 %s14, %s21
      %p101 = scmp.eq.s32.totalorder %s100, 0
      %s103 = sadd.s32 %s102, 1
      %s104 = scalar_select %p101, %s102, %s103
      %p107 = pneg %p101
      %p108 = scmp.eq.s32.totalorder %s14, 1
      %p109 = por %p107, %p108
      %p110 = scmp.ne.s32.totalorder %s102, %s105
      %p111 = scmp.eq.s32.totalorder %s14, 0
      %p112 = por %p110, %p111
      %p113 = scmp.ne.s32.totalorder %s102, %s105
      %p114 = scmp.eq.s32.totalorder %s19, 1
      %p115 = por %p113, %p114
      %p116 = scmp.ne.s32.totalorder %s105, %s106
      %p117 = scmp.eq.s32.totalorder %s19, 0
      %p118 = por %p116, %p117
      %p119 = scmp.ne.s32.totalorder %s105, %s106
      %p120 = scmp.eq.s32.totalorder %s20, 1
      %p121 = por %p119, %p120
      %p123 = scmp.ne.s32.totalorder %s106, %s122
      %p124 = scmp.eq.s32.totalorder %s20, 0
      %p125 = por %p123, %p124
      %s126 = ssub.s32 %s14, %s21
      %p127 = scmp.eq.s32.totalorder %s126, 0
      %s129 = sadd.s32 %s128, 1
      %s130 = scalar_select %p127, %s128, %s129
      %p133 = pneg %p127
      %p134 = scmp.eq.s32.totalorder %s14, 1
      %p135 = por %p133, %p134
      %p136 = scmp.ne.s32.totalorder %s128, %s131
      %p137 = scmp.eq.s32.totalorder %s14, 0
      %p138 = por %p136, %p137
      %p139 = scmp.ne.s32.totalorder %s128, %s131
      %p140 = scmp.eq.s32.totalorder %s19, 1
      %p141 = por %p139, %p140
      %p142 = scmp.ne.s32.totalorder %s131, %s132
      %p143 = scmp.eq.s32.totalorder %s19, 0
      %p144 = por %p142, %p143
      %p145 = scmp.ne.s32.totalorder %s131, %s132
      %p146 = scmp.eq.s32.totalorder %s20, 1
      %p147 = por %p145, %p146
      %p149 = scmp.ne.s32.totalorder %s132, %s148
      %p150 = scmp.eq.s32.totalorder %s20, 0
      %p151 = por %p149, %p150
      %s152 = ssub.s32 %s14, %s21
      %p153 = scmp.eq.s32.totalorder %s152, 0
      %s155 = sadd.s32 %s154, 1
      %s156 = scalar_select %p153, %s154, %s155
      %p159 = pneg %p153
      %p160 = scmp.eq.s32.totalorder %s14, 1
      %p161 = por %p159, %p160
      %p162 = scmp.ne.s32.totalorder %s154, %s157
      %p163 = scmp.eq.s32.totalorder %s14, 0
      %p164 = por %p162, %p163
      %p165 = scmp.ne.s32.totalorder %s154, %s157
      %p166 = scmp.eq.s32.totalorder %s19, 1
      %p167 = por %p165, %p166
      %p168 = scmp.ne.s32.totalorder %s157, %s158
      %p169 = scmp.eq.s32.totalorder %s19, 0
      %p170 = por %p168, %p169
      %p171 = scmp.ne.s32.totalorder %s157, %s158
      %p172 = scmp.eq.s32.totalorder %s20, 1
      %p173 = por %p171, %p172
      %p175 = scmp.ne.s32.totalorder %s158, %s174
      %p176 = scmp.eq.s32.totalorder %s20, 0
      %p177 = por %p175, %p176
      %s178 = ssub.s32 %s14, %s21
      %p179 = scmp.eq.s32.totalorder %s178, 0
      %s181 = sadd.s32 %s180, 1
      %s182 = scalar_select %p179, %s180, %s181
      %p185 = pneg %p179
      %p186 = scmp.eq.s32.totalorder %s14, 1
      %p187 = por %p185, %p186
      %p188 = scmp.ne.s32.totalorder %s180, %s183
      %p189 = scmp.eq.s32.totalorder %s14, 0
      %p190 = por %p188, %p189
      %p191 = scmp.ne.s32.totalorder %s180, %s183
      %p192 = scmp.eq.s32.totalorder %s19, 1
      %p193 = por %p191, %p192
      %p194 = scmp.ne.s32.totalorder %s183, %s184
      %p195 = scmp.eq.s32.totalorder %s19, 0
      %p196 = por %p194, %p195
      %p197 = scmp.ne.s32.totalorder %s183, %s184
      %p198 = scmp.eq.s32.totalorder %s20, 1
      %p199 = por %p197, %p198
      %p201 = scmp.ne.s32.totalorder %s184, %s200
      %p202 = scmp.eq.s32.totalorder %s20, 0
      %p203 = por %p201, %p202
      %s204 = ssub.s32 %s14, %s21
      %p205 = scmp.eq.s32.totalorder %s204, 0
      %s207 = sadd.s32 %s206, 1
      %s208 = scalar_select %p205, %s206, %s207
      %p211 = pneg %p205
      %p212 = scmp.eq.s32.totalorder %s14, 1
      %p213 = por %p211, %p212
      %p214 = scmp.ne.s32.totalorder %s206, %s209
      %p215 = scmp.eq.s32.totalorder %s14, 0
      %p216 = por %p214, %p215
      %p217 = scmp.ne.s32.totalorder %s206, %s209
      %p218 = scmp.eq.s32.totalorder %s19, 1
      %p219 = por %p217, %p218
      %p220 = scmp.ne.s32.totalorder %s209, %s210
      %p221 = scmp.eq.s32.totalorder %s19, 0
      %p222 = por %p220, %p221
      %p223 = scmp.ne.s32.totalorder %s209, %s210
      %p224 = scmp.eq.s32.totalorder %s20, 1
      %p225 = por %p223, %p224
      %p227 = scmp.ne.s32.totalorder %s210, %s226
      %p228 = scmp.eq.s32.totalorder %s20, 0
      %p229 = por %p227, %p228
      %s230 = ssub.s32 %s14, %s21
      %p231 = scmp.eq.s32.totalorder %s230, 0
      %s233 = sadd.s32 %s232, 1
      %s234 = scalar_select %p231, %s232, %s233
      %p237 = pneg %p231
      %p238 = scmp.eq.s32.totalorder %s14, 1
      %p239 = por %p237, %p238
      %p240 = scmp.ne.s32.totalorder %s232, %s235
      %p241 = scmp.eq.s32.totalorder %s14, 0
      %p242 = por %p240, %p241
      %p243 = scmp.ne.s32.totalorder %s232, %s235
      %p244 = scmp.eq.s32.totalorder %s19, 1
      %p245 = por %p243, %p244
      %p246 = scmp.ne.s32.totalorder %s235, %s236
      %p247 = scmp.eq.s32.totalorder %s19, 0
      %p248 = por %p246, %p247
      %p249 = scmp.ne.s32.totalorder %s235, %s236
      %p250 = scmp.eq.s32.totalorder %s20, 1
      %p251 = por %p249, %p250
      %p253 = scmp.ne.s32.totalorder %s236, %s252
      %p254 = scmp.eq.s32.totalorder %s20, 0
      %p255 = por %p253, %p254
      %p256 = scmp.le.s32.totalorder 1, %s14
      %p257 = scmp.lt.s32.totalorder %s14, 3
      %p258 = pnand %p256, %p257
      %p259 = pneg %p258
      // Predicated region
      $region9: #{text_rnn_forward.2} parent=5 // pred_check
        _
      $region10: #{text_rnn_forward.2} parent=5 // pred_check_branch
        %261 = sbr.rel (%p258) target = $region12
      $region11: #{text_rnn_forward.2} parent=5 // pred_region
        %s262 = ssub.s32 %s14, 1
      $region12: #{text_rnn_forward.2} parent=5 // pred_fallthru
        _
      %p263 = scmp.lt.s32.totalorder %s14, 2
      // Predicated region
      $region13: #{text_rnn_forward.2} parent=5 // pred_check
        %p264 = pneg %p263
      $region14: #{text_rnn_forward.2} parent=5 // pred_check_branch
        %266 = sbr.rel (%p264) target = $region16
      $region15: #{text_rnn_forward.2} parent=5 // pred_region
        // Predicated region
        $region17: #{text_rnn_forward.2} parent=15 // pred_check
          %p267 = pneg %p34
        $region18: #{text_rnn_forward.2} parent=15 // pred_check_branch
          %269 = sbr.rel (%p267) target = $region20
        $region19: #{text_rnn_forward.2} parent=15 // pred_region
          %p270 = scmp.lt.s32.totalorder %s14, 1
          %s271 = scalar_select %p270, %s14, 1
          %s272 = smul.addr %s271, 8
          %s273 = smul.addr %s272, 2
          %s274 = scalar_lea.vmem %s0, %s273
        $region20: #{text_rnn_forward.2} parent=15 // pred_fallthru
          _
        // Predicated region
        $region21: #{text_rnn_forward.2} parent=15 // pred_check
          %p275 = pneg %p60
        $region22: #{text_rnn_forward.2} parent=15 // pred_check_branch
          %277 = sbr.rel (%p275) target = $region24
        $region23: #{text_rnn_forward.2} parent=15 // pred_region
          %p278 = scmp.lt.s32.totalorder %s14, 1
          %s279 = scalar_select %p278, %s14, 1
          %s280 = smul.addr %s279, 8
          %s281 = smul.addr %s280, 2
          %s282 = scalar_lea.vmem %s1, %s281
        $region24: #{text_rnn_forward.2} parent=15 // pred_fallthru
          _
        // Predicated region
        $region25: #{text_rnn_forward.2} parent=15 // pred_check
          %p283 = pneg %p86
        $region26: #{text_rnn_forward.2} parent=15 // pred_check_branch
          %285 = sbr.rel (%p283) target = $region28
        $region27: #{text_rnn_forward.2} parent=15 // pred_region
          %p286 = scmp.lt.s32.totalorder %s14, 1
          %s287 = scalar_select %p286, %s14, 1
          %s288 = smul.addr %s287, 8
          %s289 = smul.addr %s288, 2
          %s290 = scalar_lea.vmem %s2, %s289
        $region28: #{text_rnn_forward.2} parent=15 // pred_fallthru
          _
        // Predicated region
        $region29: #{text_rnn_forward.2} parent=15 // pred_check
          %p291 = pneg %p112
        $region30: #{text_rnn_forward.2} parent=15 // pred_check_branch
          %293 = sbr.rel (%p291) target = $region32
        $region31: #{text_rnn_forward.2} parent=15 // pred_region
          %p294 = scmp.lt.s32.totalorder %s14, 1
          %s295 = scalar_select %p294, %s14, 1
          %s296 = smul.addr %s295, 8
          %s297 = smul.addr %s296, 2
          %s298 = scalar_lea.vmem %s3, %s297
        $region32: #{text_rnn_forward.2} parent=15 // pred_fallthru
          _
        // Predicated region
        $region33: #{text_rnn_forward.2} parent=15 // pred_check
          %p299 = pneg %p138
        $region34: #{text_rnn_forward.2} parent=15 // pred_check_branch
          %301 = sbr.rel (%p299) target = $region36
        $region35: #{text_rnn_forward.2} parent=15 // pred_region
          %p302 = scmp.lt.s32.totalorder %s14, 1
          %s303 = scalar_select %p302, %s14, 1
          %s304 = smul.addr %s303, 4
          %s305 = smul.addr %s304, 8
          %s306 = scalar_lea.vmem %s4, %s305
        $region36: #{text_rnn_forward.2} parent=15 // pred_fallthru
          _
        // Predicated region
        $region37: #{text_rnn_forward.2} parent=15 // pred_check
          %p307 = pneg %p164
        $region38: #{text_rnn_forward.2} parent=15 // pred_check_branch
          %309 = sbr.rel (%p307) target = $region40
        $region39: #{text_rnn_forward.2} parent=15 // pred_region
          %p310 = scmp.lt.s32.totalorder %s14, 1
          %s311 = scalar_select %p310, %s14, 1
          %s312 = smul.addr %s311, 4
          %s313 = smul.addr %s312, 8
          %s314 = scalar_lea.vmem %s5, %s313
        $region40: #{text_rnn_forward.2} parent=15 // pred_fallthru
          _
        // Predicated region
        $region41: #{text_rnn_forward.2} parent=15 // pred_check
          %p315 = pneg %p190
        $region42: #{text_rnn_forward.2} parent=15 // pred_check_branch
          %317 = sbr.rel (%p315) target = $region44
        $region43: #{text_rnn_forward.2} parent=15 // pred_region
          %p318 = scmp.lt.s32.totalorder %s14, 1
          %s319 = scalar_select %p318, %s14, 1
          %s320 = smul.addr %s319, 4
          %s321 = smul.addr %s320, 8
          %s322 = scalar_lea.vmem %s6, %s321
        $region44: #{text_rnn_forward.2} parent=15 // pred_fallthru
          _
        // Predicated region
        $region45: #{text_rnn_forward.2} parent=15 // pred_check
          %p323 = pneg %p216
        $region46: #{text_rnn_forward.2} parent=15 // pred_check_branch
          %325 = sbr.rel (%p323) target = $region48
        $region47: #{text_rnn_forward.2} parent=15 // pred_region
          %p326 = scmp.lt.s32.totalorder %s14, 1
          %s327 = scalar_select %p326, %s14, 1
          %s328 = smul.addr %s327, 4
          %s329 = smul.addr %s328, 8
          %s330 = scalar_lea.vmem %s7, %s329
        $region48: #{text_rnn_forward.2} parent=15 // pred_fallthru
          _
      $region16: #{text_rnn_forward.2} parent=5 // pred_fallthru
        _
      %p331 = scmp.le.s32.totalorder 1, %s14
      %p332 = scmp.lt.s32.totalorder %s14, 3
      %p333 = pnand %p331, %p332
      %p334 = pneg %p333
      // Predicated region
      $region49: #{text_rnn_forward.2} parent=5 // pred_check
        _
      $region50: #{text_rnn_forward.2} parent=5 // pred_check_branch
        %336 = sbr.rel (%p333) target = $region52
      $region51: #{text_rnn_forward.2} parent=5 // pred_region
        %s337 = ssub.s32 %s14, 1
        %p338 = scmp.lt.s32.totalorder %s19, 1
        %s339 = scalar_select %p338, %s19, 1
        %s340 = smul.addr %s339, 8
        %s341 = smul.addr %s340, 2
        %s342 = scalar_lea.vmem %s0, %s341
        %p343 = pneg %p40
        %p344 = pneg %p37
        %p345 = scmp.lt.s32.totalorder %s19, 1
        %s346 = scalar_select %p345, %s19, 1
        %s347 = smul.addr %s346, 8
        %s348 = smul.addr %s347, 2
        %s349 = scalar_lea.vmem %s1, %s348
        %p350 = pneg %p66
        %p351 = pneg %p63
        %p352 = scmp.lt.s32.totalorder %s19, 1
        %s353 = scalar_select %p352, %s19, 1
        %s354 = smul.addr %s353, 8
        %s355 = smul.addr %s354, 2
        %s356 = scalar_lea.vmem %s2, %s355
        %p357 = pneg %p92
        %p358 = pneg %p89
        %p359 = scmp.lt.s32.totalorder %s19, 1
        %s360 = scalar_select %p359, %s19, 1
        %s361 = smul.addr %s360, 8
        %s362 = smul.addr %s361, 2
        %s363 = scalar_lea.vmem %s3, %s362
        %p364 = pneg %p118
        %p365 = pneg %p115
        %p366 = scmp.lt.s32.totalorder %s19, 1
        %s367 = scalar_select %p366, %s19, 1
        %s368 = smul.addr %s367, 4
        %s369 = smul.addr %s368, 8
        %s370 = scalar_lea.vmem %s4, %s369
        %p371 = pneg %p144
        %p372 = pneg %p141
        %p373 = scmp.lt.s32.totalorder %s19, 1
        %s374 = scalar_select %p373, %s19, 1
        %s375 = smul.addr %s374, 4
        %s376 = smul.addr %s375, 8
        %s377 = scalar_lea.vmem %s5, %s376
        %p378 = pneg %p170
        %p379 = pneg %p167
        %p380 = scmp.lt.s32.totalorder %s19, 1
        %s381 = scalar_select %p380, %s19, 1
        %s382 = smul.addr %s381, 4
        %s383 = smul.addr %s382, 8
        %s384 = scalar_lea.vmem %s6, %s383
        %p385 = pneg %p196
        %p386 = pneg %p193
        %p387 = scmp.lt.s32.totalorder %s19, 1
        %s388 = scalar_select %p387, %s19, 1
        %s389 = smul.addr %s388, 4
        %s390 = smul.addr %s389, 8
        %s391 = scalar_lea.vmem %s7, %s390
        %p392 = pneg %p222
        %p393 = pneg %p219
        %p394 = pneg %p248
        %p395 = pneg %p245
        %s396 = sand.u32 %s235, 1
        %s397 = sand.u32 %s235, 1
        %s398 = smul.addr %s397, 16
        %s399 = scalar_lea.vmem [#allocation2], %s398
        %p400 = scmp.lt.s32.totalorder %s19, 1
        %s401 = scalar_select %p400, %s19, 1
        %s402 = smul.addr %s401, 8
        %s403 = smul.addr %s402, 2
        %s404 = scalar_lea.vmem %s0, %s403
        %p405 = scmp.lt.s32.totalorder %s19, 1
        %s406 = scalar_select %p405, %s19, 1
        %s407 = smul.addr %s406, 8
        %s408 = smul.addr %s407, 2
        %s409 = scalar_lea.vmem %s1, %s408
        %p410 = scmp.lt.s32.totalorder %s19, 1
        %s411 = scalar_select %p410, %s19, 1
        %s412 = smul.addr %s411, 8
        %s413 = smul.addr %s412, 2
        %s414 = scalar_lea.vmem %s2, %s413
        %p415 = scmp.lt.s32.totalorder %s19, 1
        %s416 = scalar_select %p415, %s19, 1
        %s417 = smul.addr %s416, 8
        %s418 = smul.addr %s417, 2
        %s419 = scalar_lea.vmem %s3, %s418
        %p420 = scmp.lt.s32.totalorder %s19, 1
        %s421 = scalar_select %p420, %s19, 1
        %s422 = smul.addr %s421, 4
        %s423 = smul.addr %s422, 8
        %s424 = scalar_lea.vmem %s4, %s423
        %p425 = scmp.lt.s32.totalorder %s19, 1
        %s426 = scalar_select %p425, %s19, 1
        %s427 = smul.addr %s426, 4
        %s428 = smul.addr %s427, 8
        %s429 = scalar_lea.vmem %s5, %s428
        %p430 = scmp.lt.s32.totalorder %s19, 1
        %s431 = scalar_select %p430, %s19, 1
        %s432 = smul.addr %s431, 4
        %s433 = smul.addr %s432, 8
        %s434 = scalar_lea.vmem %s6, %s433
        %p435 = scmp.lt.s32.totalorder %s19, 1
        %s436 = scalar_select %p435, %s19, 1
        %s437 = smul.addr %s436, 4
        %s438 = smul.addr %s437, 8
        %s439 = scalar_lea.vmem %s7, %s438
        %v440 = vld [vmem:[%s424] sm:$0xff]
        %v441 = vld [vmem:[%s424 + $0x8] sm:$0xff]
        %v442 = vld [vmem:[%s424 + $0x10] sm:$0xff]
        %v443 = vld [vmem:[%s424 + $0x18] sm:$0xff]
        %v444 = vld [vmem:[%s429] sm:$0xff]
        %v445 = vld [vmem:[%s429 + $0x8] sm:$0xff]
        %v446 = vld [vmem:[%s429 + $0x10] sm:$0xff]
        %v447 = vld [vmem:[%s429 + $0x18] sm:$0xff]
        %v448 = vld [vmem:[%s434] sm:$0xff]
        %v449 = vld [vmem:[%s434 + $0x8] sm:$0xff]
        %v450 = vld [vmem:[%s434 + $0x10] sm:$0xff]
        %v451 = vld [vmem:[%s434 + $0x18] sm:$0xff]
        %v452 = vld [vmem:[%s439] sm:$0xff]
        %v453 = vld [vmem:[%s439 + $0x8] sm:$0xff]
        %v454 = vld [vmem:[%s439 + $0x10] sm:$0xff]
        %v455 = vld [vmem:[%s439 + $0x18] sm:$0xff]
        %s456 = smul.u32 %s19, 7
        %s457 = smul.u32 %s456, 2
        %s458 = scalar_lea.vmem %s404, %s457
        %v459 = vld [vmem:[%s458] sm:$0x3]
        %vm460 = vcmask 261120
        %v462 = vsel %vm460, 0.0, 0
        %464 = vmatpush.msra.mxu0 0.0
        %465 = vmatpush.msra.mxu0 0.0
        %466 = vmatpush.msra.mxu0 0.0
        %467 = vmatpush.msra.mxu0 0.0
        %468 = vmatpush.msra.mxu0 0.0
        %469 = vmatpush.msra.mxu0 0.0
        %470 = vmatpush.msra.mxu0 0.0
        %471 = vmatpush.msra.mxu0 0.0
        %472 = vmatpush.msra.mxu0 0.0
        %473 = vmatpush.msra.mxu0 0.0
        %474 = vmatpush.msra.mxu0 0.0
        %475 = vmatpush.msra.mxu0 0.0
        %476 = vmatpush.msra.mxu0 %v443
        %477 = vmatpush.msra.mxu0 %v442
        %478 = vmatpush.msra.mxu0 %v441
        %479 = vmatpush.msra.mxu0 %v440
        %480 = vmatmul.f32.gmra.mxu0 %v462
        %v481 = vpop.f32.mrf.mxu0
        %v482 = vadd.f32 0.0, %v481
        %483 = vdwg.mxu0
        %v484 = vadd.f32 %v459, %v482
        %v485 = vxor.u32 %v484, 2147483648
        %v486 = vmul.f32 %v485, 1.442695
        %v487 = vpow.pop %v486
        %v488 = vadd.f32 %v487, 1.0
        %v489 = vrcp.pop %v488
        %v490 = vmul.f32 %v488, %v489
        %v491 = vsub.f32 1.0, %v490
        %v492 = vmul.f32 %v489, %v491
        %v493 = vadd.f32 %v489, %v492
        %vm494 = vweird.f32 %v488
        %vm495 = vweird.f32 %v489
        %vm496 = vmor %vm494, %vm495
        %v497 = vsel %vm496, %v489, %v493
        %v498 = vand.u32 2147483647, %v488
        %vm499 = vcmp.eq.f32.partialorder %v498, 8.507059e+37
        %v500 = vand.u32 %v488, 2147483648
        %v501 = vor.u32 1.1754944e-38, %v500
        %v502 = vsel %vm499, %v501, %v497
        %v503 = vmul.f32 1.0, %v502
        %s504 = scalar_lea.vmem %s409, %s457
        %v505 = vld [vmem:[%s504] sm:$0x3]
        %506 = vmatpush.msra.mxu0 0.0
        %507 = vmatpush.msra.mxu0 0.0
        %508 = vmatpush.msra.mxu0 0.0
        %509 = vmatpush.msra.mxu0 0.0
        %510 = vmatpush.msra.mxu0 0.0
        %511 = vmatpush.msra.mxu0 0.0
        %512 = vmatpush.msra.mxu0 0.0
        %513 = vmatpush.msra.mxu0 0.0
        %514 = vmatpush.msra.mxu0 0.0
        %515 = vmatpush.msra.mxu0 0.0
        %516 = vmatpush.msra.mxu0 0.0
        %517 = vmatpush.msra.mxu0 0.0
        %518 = vmatpush.msra.mxu0 %v447
        %519 = vmatpush.msra.mxu0 %v446
        %520 = vmatpush.msra.mxu0 %v445
        %521 = vmatpush.msra.mxu0 %v444
        %522 = vmatmul.f32.gmra.mxu0 %v462
        %v523 = vpop.f32.mrf.mxu0
        %v524 = vadd.f32 0.0, %v523
        %525 = vdwg.mxu0
        %v526 = vadd.f32 %v505, %v524
        %v527 = vxor.u32 %v526, 2147483648
        %v528 = vmul.f32 %v527, 1.442695
        %v529 = vpow.pop %v528
        %v530 = vadd.f32 %v529, 1.0
        %v531 = vrcp.pop %v530
        %v532 = vmul.f32 %v530, %v531
        %v533 = vsub.f32 1.0, %v532
        %v534 = vmul.f32 %v531, %v533
        %v535 = vadd.f32 %v531, %v534
        %vm536 = vweird.f32 %v530
        %vm537 = vweird.f32 %v531
        %vm538 = vmor %vm536, %vm537
        %v539 = vsel %vm538, %v531, %v535
        %v540 = vand.u32 2147483647, %v530
        %vm541 = vcmp.eq.f32.partialorder %v540, 8.507059e+37
        %v542 = vand.u32 %v530, 2147483648
        %v543 = vor.u32 1.1754944e-38, %v542
        %v544 = vsel %vm541, %v543, %v539
        %v545 = vmul.f32 1.0, %v544
        %s546 = scalar_lea.vmem %s414, %s457
        %v547 = vld [vmem:[%s546] sm:$0x3]
        %548 = vmatpush.msra.mxu0 0.0
        %549 = vmatpush.msra.mxu0 0.0
        %550 = vmatpush.msra.mxu0 0.0
        %551 = vmatpush.msra.mxu0 0.0
        %552 = vmatpush.msra.mxu0 0.0
        %553 = vmatpush.msra.mxu0 0.0
        %554 = vmatpush.msra.mxu0 0.0
        %555 = vmatpush.msra.mxu0 0.0
        %556 = vmatpush.msra.mxu0 0.0
        %557 = vmatpush.msra.mxu0 0.0
        %558 = vmatpush.msra.mxu0 0.0
        %559 = vmatpush.msra.mxu0 0.0
        %560 = vmatpush.msra.mxu0 %v451
        %561 = vmatpush.msra.mxu0 %v450
        %562 = vmatpush.msra.mxu0 %v449
        %563 = vmatpush.msra.mxu0 %v448
        %564 = vmatmul.f32.gmra.mxu0 %v462
        %v565 = vpop.f32.mrf.mxu0
        %v566 = vadd.f32 0.0, %v565
        %567 = vdwg.mxu0
        %v568 = vadd.f32 %v547, %v566
        %v569 = vtanh.pop %v568
        %s570 = scalar_lea.vmem %s419, %s457
        %v571 = vld [vmem:[%s570] sm:$0x3]
        %572 = vmatpush.msra.mxu0 0.0
        %573 = vmatpush.msra.mxu0 0.0
        %574 = vmatpush.msra.mxu0 0.0
        %575 = vmatpush.msra.mxu0 0.0
        %576 = vmatpush.msra.mxu0 0.0
        %577 = vmatpush.msra.mxu0 0.0
        %578 = vmatpush.msra.mxu0 0.0
        %579 = vmatpush.msra.mxu0 0.0
        %580 = vmatpush.msra.mxu0 0.0
        %581 = vmatpush.msra.mxu0 0.0
        %582 = vmatpush.msra.mxu0 0.0
        %583 = vmatpush.msra.mxu0 0.0
        %584 = vmatpush.msra.mxu0 %v455
        %585 = vmatpush.msra.mxu0 %v454
        %586 = vmatpush.msra.mxu0 %v453
        %587 = vmatpush.msra.mxu0 %v452
        %588 = vmatmul.f32.gmra.mxu0 %v462
        %v589 = vpop.f32.mrf.mxu0
        %v590 = vadd.f32 0.0, %v589
        %591 = vdwg.mxu0
        %v592 = vadd.f32 %v571, %v590
        %v593 = vxor.u32 %v592, 2147483648
        %v594 = vmul.f32 %v593, 1.442695
        %v595 = vpow.pop %v594
        %v596 = vadd.f32 %v595, 1.0
        %v597 = vrcp.pop %v596
        %v598 = vmul.f32 %v596, %v597
        %v599 = vsub.f32 1.0, %v598
        %v600 = vmul.f32 %v597, %v599
        %v601 = vadd.f32 %v597, %v600
        %vm602 = vweird.f32 %v596
        %vm603 = vweird.f32 %v597
        %vm604 = vmor %vm602, %vm603
        %v605 = vsel %vm604, %v597, %v601
        %v606 = vand.u32 2147483647, %v596
        %vm607 = vcmp.eq.f32.partialorder %v606, 8.507059e+37
        %v608 = vand.u32 %v596, 2147483648
        %v609 = vor.u32 1.1754944e-38, %v608
        %v610 = vsel %vm607, %v609, %v605
        %v611 = vmul.f32 1.0, %v610
        %v612 = vmul.f32 %v545, 0.0
        %v613 = vmul.f32 %v503, %v569
        %v614 = vadd.f32 %v612, %v613
        %v615 = vtanh.pop %v614
        %v616 = vmul.f32 %v611, %v615
        %s617 = scalar_lea.vmem %s399, %s457 [#allocation2]
        %vm618 = vcmask 254976
        %619 = vst.msk [vmem:[%s617] sm:$0x3] %vm618, %v616
        %s620 = smul.u32 %s19, 5
        %s621 = sadd.s32 %s620, 1
        %s622 = smul.u32 %s621, 2
        %s623 = scalar_lea.vmem %s404, %s622
        %v624 = vld [vmem:[%s623] sm:$0x3]
        %v626 = vsel %vm460, %v616, 0
        %628 = vmatpush.msra.mxu0 0.0
        %629 = vmatpush.msra.mxu0 0.0
        %630 = vmatpush.msra.mxu0 0.0
        %631 = vmatpush.msra.mxu0 0.0
        %632 = vmatpush.msra.mxu0 0.0
        %633 = vmatpush.msra.mxu0 0.0
        %634 = vmatpush.msra.mxu0 0.0
        %635 = vmatpush.msra.mxu0 0.0
        %636 = vmatpush.msra.mxu0 0.0
        %637 = vmatpush.msra.mxu0 0.0
        %638 = vmatpush.msra.mxu0 0.0
        %639 = vmatpush.msra.mxu0 0.0
        %640 = vmatpush.msra.mxu0 %v443
        %641 = vmatpush.msra.mxu0 %v442
        %642 = vmatpush.msra.mxu0 %v441
        %643 = vmatpush.msra.mxu0 %v440
        %644 = vmatmul.f32.gmra.mxu0 %v626
        %v645 = vpop.f32.mrf.mxu0
        %v646 = vadd.f32 0.0, %v645
        %647 = vdwg.mxu0
        %v648 = vadd.f32 %v624, %v646
        %v649 = vxor.u32 %v648, 2147483648
        %v650 = vmul.f32 %v649, 1.442695
        %v651 = vpow.pop %v650
        %v652 = vadd.f32 %v651, 1.0
        %v653 = vrcp.pop %v652
        %v654 = vmul.f32 %v652, %v653
        %v655 = vsub.f32 1.0, %v654
        %v656 = vmul.f32 %v653, %v655
        %v657 = vadd.f32 %v653, %v656
        %vm658 = vweird.f32 %v652
        %vm659 = vweird.f32 %v653
        %vm660 = vmor %vm658, %vm659
        %v661 = vsel %vm660, %v653, %v657
        %v662 = vand.u32 2147483647, %v652
        %vm663 = vcmp.eq.f32.partialorder %v662, 8.507059e+37
        %v664 = vand.u32 %v652, 2147483648
        %v665 = vor.u32 1.1754944e-38, %v664
        %v666 = vsel %vm663, %v665, %v661
        %v667 = vmul.f32 1.0, %v666
        %s668 = scalar_lea.vmem %s409, %s622
        %v669 = vld [vmem:[%s668] sm:$0x3]
        %670 = vmatpush.msra.mxu0 0.0
        %671 = vmatpush.msra.mxu0 0.0
        %672 = vmatpush.msra.mxu0 0.0
        %673 = vmatpush.msra.mxu0 0.0
        %674 = vmatpush.msra.mxu0 0.0
        %675 = vmatpush.msra.mxu0 0.0
        %676 = vmatpush.msra.mxu0 0.0
        %677 = vmatpush.msra.mxu0 0.0
        %678 = vmatpush.msra.mxu0 0.0
        %679 = vmatpush.msra.mxu0 0.0
        %680 = vmatpush.msra.mxu0 0.0
        %681 = vmatpush.msra.mxu0 0.0
        %682 = vmatpush.msra.mxu0 %v447
        %683 = vmatpush.msra.mxu0 %v446
        %684 = vmatpush.msra.mxu0 %v445
        %685 = vmatpush.msra.mxu0 %v444
        %686 = vmatmul.f32.gmra.mxu0 %v626
        %v687 = vpop.f32.mrf.mxu0
        %v688 = vadd.f32 0.0, %v687
        %689 = vdwg.mxu0
        %v690 = vadd.f32 %v669, %v688
        %v691 = vxor.u32 %v690, 2147483648
        %v692 = vmul.f32 %v691, 1.442695
        %v693 = vpow.pop %v692
        %v694 = vadd.f32 %v693, 1.0
        %v695 = vrcp.pop %v694
        %v696 = vmul.f32 %v694, %v695
        %v697 = vsub.f32 1.0, %v696
        %v698 = vmul.f32 %v695, %v697
        %v699 = vadd.f32 %v695, %v698
        %vm700 = vweird.f32 %v694
        %vm701 = vweird.f32 %v695
        %vm702 = vmor %vm700, %vm701
        %v703 = vsel %vm702, %v695, %v699
        %v704 = vand.u32 2147483647, %v694
        %vm705 = vcmp.eq.f32.partialorder %v704, 8.507059e+37
        %v706 = vand.u32 %v694, 2147483648
        %v707 = vor.u32 1.1754944e-38, %v706
        %v708 = vsel %vm705, %v707, %v703
        %v709 = vmul.f32 1.0, %v708
        %s710 = scalar_lea.vmem %s414, %s622
        %v711 = vld [vmem:[%s710] sm:$0x3]
        %712 = vmatpush.msra.mxu0 0.0
        %713 = vmatpush.msra.mxu0 0.0
        %714 = vmatpush.msra.mxu0 0.0
        %715 = vmatpush.msra.mxu0 0.0
        %716 = vmatpush.msra.mxu0 0.0
        %717 = vmatpush.msra.mxu0 0.0
        %718 = vmatpush.msra.mxu0 0.0
        %719 = vmatpush.msra.mxu0 0.0
        %720 = vmatpush.msra.mxu0 0.0
        %721 = vmatpush.msra.mxu0 0.0
        %722 = vmatpush.msra.mxu0 0.0
        %723 = vmatpush.msra.mxu0 0.0
        %724 = vmatpush.msra.mxu0 %v451
        %725 = vmatpush.msra.mxu0 %v450
        %726 = vmatpush.msra.mxu0 %v449
        %727 = vmatpush.msra.mxu0 %v448
        %728 = vmatmul.f32.gmra.mxu0 %v626
        %v729 = vpop.f32.mrf.mxu0
        %v730 = vadd.f32 0.0, %v729
        %731 = vdwg.mxu0
        %v732 = vadd.f32 %v711, %v730
        %v733 = vtanh.pop %v732
        %s734 = scalar_lea.vmem %s419, %s622
        %v735 = vld [vmem:[%s734] sm:$0x3]
        %736 = vmatpush.msra.mxu0 0.0
        %737 = vmatpush.msra.mxu0 0.0
        %738 = vmatpush.msra.mxu0 0.0
        %739 = vmatpush.msra.mxu0 0.0
        %740 = vmatpush.msra.mxu0 0.0
        %741 = vmatpush.msra.mxu0 0.0
        %742 = vmatpush.msra.mxu0 0.0
        %743 = vmatpush.msra.mxu0 0.0
        %744 = vmatpush.msra.mxu0 0.0
        %745 = vmatpush.msra.mxu0 0.0
        %746 = vmatpush.msra.mxu0 0.0
        %747 = vmatpush.msra.mxu0 0.0
        %748 = vmatpush.msra.mxu0 %v455
        %749 = vmatpush.msra.mxu0 %v454
        %750 = vmatpush.msra.mxu0 %v453
        %751 = vmatpush.msra.mxu0 %v452
        %752 = vmatmul.f32.gmra.mxu0 %v626
        %v753 = vpop.f32.mrf.mxu0
        %v754 = vadd.f32 0.0, %v753
        %755 = vdwg.mxu0
        %v756 = vadd.f32 %v735, %v754
        %v757 = vxor.u32 %v756, 2147483648
        %v758 = vmul.f32 %v757, 1.442695
        %v759 = vpow.pop %v758
        %v760 = vadd.f32 %v759, 1.0
        %v761 = vrcp.pop %v760
        %v762 = vmul.f32 %v760, %v761
        %v763 = vsub.f32 1.0, %v762
        %v764 = vmul.f32 %v761, %v763
        %v765 = vadd.f32 %v761, %v764
        %vm766 = vweird.f32 %v760
        %vm767 = vweird.f32 %v761
        %vm768 = vmor %vm766, %vm767
        %v769 = vsel %vm768, %v761, %v765
        %v770 = vand.u32 2147483647, %v760
        %vm771 = vcmp.eq.f32.partialorder %v770, 8.507059e+37
        %v772 = vand.u32 %v760, 2147483648
        %v773 = vor.u32 1.1754944e-38, %v772
        %v774 = vsel %vm771, %v773, %v769
        %v775 = vmul.f32 1.0, %v774
        %v776 = vmul.f32 %v709, %v614
        %v777 = vmul.f32 %v667, %v733
        %v778 = vadd.f32 %v776, %v777
        %v779 = vtanh.pop %v778
        %v780 = vmul.f32 %v775, %v779
        %s781 = scalar_lea.vmem %s399, %s622 [#allocation2]
        %782 = vst.msk [vmem:[%s781] sm:$0x3] %vm618, %v780
        %s783 = smul.u32 %s19, 3
        %s784 = sadd.s32 %s783, 2
        %s785 = smul.u32 %s784, 2
        %s786 = scalar_lea.vmem %s404, %s785
        %v787 = vld [vmem:[%s786] sm:$0x3]
        %v789 = vsel %vm460, %v780, 0
        %791 = vmatpush.msra.mxu0 0.0
        %792 = vmatpush.msra.mxu0 0.0
        %793 = vmatpush.msra.mxu0 0.0
        %794 = vmatpush.msra.mxu0 0.0
        %795 = vmatpush.msra.mxu0 0.0
        %796 = vmatpush.msra.mxu0 0.0
        %797 = vmatpush.msra.mxu0 0.0
        %798 = vmatpush.msra.mxu0 0.0
        %799 = vmatpush.msra.mxu0 0.0
        %800 = vmatpush.msra.mxu0 0.0
        %801 = vmatpush.msra.mxu0 0.0
        %802 = vmatpush.msra.mxu0 0.0
        %803 = vmatpush.msra.mxu0 %v443
        %804 = vmatpush.msra.mxu0 %v442
        %805 = vmatpush.msra.mxu0 %v441
        %806 = vmatpush.msra.mxu0 %v440
        %807 = vmatmul.f32.gmra.mxu0 %v789
        %v808 = vpop.f32.mrf.mxu0
        %v809 = vadd.f32 0.0, %v808
        %810 = vdwg.mxu0
        %v811 = vadd.f32 %v787, %v809
        %v812 = vxor.u32 %v811, 2147483648
        %v813 = vmul.f32 %v812, 1.442695
        %v814 = vpow.pop %v813
        %v815 = vadd.f32 %v814, 1.0
        %v816 = vrcp.pop %v815
        %v817 = vmul.f32 %v815, %v816
        %v818 = vsub.f32 1.0, %v817
        %v819 = vmul.f32 %v816, %v818
        %v820 = vadd.f32 %v816, %v819
        %vm821 = vweird.f32 %v815
        %vm822 = vweird.f32 %v816
        %vm823 = vmor %vm821, %vm822
        %v824 = vsel %vm823, %v816, %v820
        %v825 = vand.u32 2147483647, %v815
        %vm826 = vcmp.eq.f32.partialorder %v825, 8.507059e+37
        %v827 = vand.u32 %v815, 2147483648
        %v828 = vor.u32 1.1754944e-38, %v827
        %v829 = vsel %vm826, %v828, %v824
        %v830 = vmul.f32 1.0, %v829
        %s831 = scalar_lea.vmem %s409, %s785
        %v832 = vld [vmem:[%s831] sm:$0x3]
        %833 = vmatpush.msra.mxu0 0.0
        %834 = vmatpush.msra.mxu0 0.0
        %835 = vmatpush.msra.mxu0 0.0
        %836 = vmatpush.msra.mxu0 0.0
        %837 = vmatpush.msra.mxu0 0.0
        %838 = vmatpush.msra.mxu0 0.0
        %839 = vmatpush.msra.mxu0 0.0
        %840 = vmatpush.msra.mxu0 0.0
        %841 = vmatpush.msra.mxu0 0.0
        %842 = vmatpush.msra.mxu0 0.0
        %843 = vmatpush.msra.mxu0 0.0
        %844 = vmatpush.msra.mxu0 0.0
        %845 = vmatpush.msra.mxu0 %v447
        %846 = vmatpush.msra.mxu0 %v446
        %847 = vmatpush.msra.mxu0 %v445
        %848 = vmatpush.msra.mxu0 %v444
        %849 = vmatmul.f32.gmra.mxu0 %v789
        %v850 = vpop.f32.mrf.mxu0
        %v851 = vadd.f32 0.0, %v850
        %852 = vdwg.mxu0
        %v853 = vadd.f32 %v832, %v851
        %v854 = vxor.u32 %v853, 2147483648
        %v855 = vmul.f32 %v854, 1.442695
        %v856 = vpow.pop %v855
        %v857 = vadd.f32 %v856, 1.0
        %v858 = vrcp.pop %v857
        %v859 = vmul.f32 %v857, %v858
        %v860 = vsub.f32 1.0, %v859
        %v861 = vmul.f32 %v858, %v860
        %v862 = vadd.f32 %v858, %v861
        %vm863 = vweird.f32 %v857
        %vm864 = vweird.f32 %v858
        %vm865 = vmor %vm863, %vm864
        %v866 = vsel %vm865, %v858, %v862
        %v867 = vand.u32 2147483647, %v857
        %vm868 = vcmp.eq.f32.partialorder %v867, 8.507059e+37
        %v869 = vand.u32 %v857, 2147483648
        %v870 = vor.u32 1.1754944e-38, %v869
        %v871 = vsel %vm868, %v870, %v866
        %v872 = vmul.f32 1.0, %v871
        %s873 = scalar_lea.vmem %s414, %s785
        %v874 = vld [vmem:[%s873] sm:$0x3]
        %875 = vmatpush.msra.mxu0 0.0
        %876 = vmatpush.msra.mxu0 0.0
        %877 = vmatpush.msra.mxu0 0.0
        %878 = vmatpush.msra.mxu0 0.0
        %879 = vmatpush.msra.mxu0 0.0
        %880 = vmatpush.msra.mxu0 0.0
        %881 = vmatpush.msra.mxu0 0.0
        %882 = vmatpush.msra.mxu0 0.0
        %883 = vmatpush.msra.mxu0 0.0
        %884 = vmatpush.msra.mxu0 0.0
        %885 = vmatpush.msra.mxu0 0.0
        %886 = vmatpush.msra.mxu0 0.0
        %887 = vmatpush.msra.mxu0 %v451
        %888 = vmatpush.msra.mxu0 %v450
        %889 = vmatpush.msra.mxu0 %v449
        %890 = vmatpush.msra.mxu0 %v448
        %891 = vmatmul.f32.gmra.mxu0 %v789
        %v892 = vpop.f32.mrf.mxu0
        %v893 = vadd.f32 0.0, %v892
        %894 = vdwg.mxu0
        %v895 = vadd.f32 %v874, %v893
        %v896 = vtanh.pop %v895
        %s897 = scalar_lea.vmem %s419, %s785
        %v898 = vld [vmem:[%s897] sm:$0x3]
        %899 = vmatpush.msra.mxu0 0.0
        %900 = vmatpush.msra.mxu0 0.0
        %901 = vmatpush.msra.mxu0 0.0
        %902 = vmatpush.msra.mxu0 0.0
        %903 = vmatpush.msra.mxu0 0.0
        %904 = vmatpush.msra.mxu0 0.0
        %905 = vmatpush.msra.mxu0 0.0
        %906 = vmatpush.msra.mxu0 0.0
        %907 = vmatpush.msra.mxu0 0.0
        %908 = vmatpush.msra.mxu0 0.0
        %909 = vmatpush.msra.mxu0 0.0
        %910 = vmatpush.msra.mxu0 0.0
        %911 = vmatpush.msra.mxu0 %v455
        %912 = vmatpush.msra.mxu0 %v454
        %913 = vmatpush.msra.mxu0 %v453
        %914 = vmatpush.msra.mxu0 %v452
        %915 = vmatmul.f32.gmra.mxu0 %v789
        %v916 = vpop.f32.mrf.mxu0
        %v917 = vadd.f32 0.0, %v916
        %918 = vdwg.mxu0
        %v919 = vadd.f32 %v898, %v917
        %v920 = vxor.u32 %v919, 2147483648
        %v921 = vmul.f32 %v920, 1.442695
        %v922 = vpow.pop %v921
        %v923 = vadd.f32 %v922, 1.0
        %v924 = vrcp.pop %v923
        %v925 = vmul.f32 %v923, %v924
        %v926 = vsub.f32 1.0, %v925
        %v927 = vmul.f32 %v924, %v926
        %v928 = vadd.f32 %v924, %v927
        %vm929 = vweird.f32 %v923
        %vm930 = vweird.f32 %v924
        %vm931 = vmor %vm929, %vm930
        %v932 = vsel %vm931, %v924, %v928
        %v933 = vand.u32 2147483647, %v923
        %vm934 = vcmp.eq.f32.partialorder %v933, 8.507059e+37
        %v935 = vand.u32 %v923, 2147483648
        %v936 = vor.u32 1.1754944e-38, %v935
        %v937 = vsel %vm934, %v936, %v932
        %v938 = vmul.f32 1.0, %v937
        %v939 = vmul.f32 %v872, %v778
        %v940 = vmul.f32 %v830, %v896
        %v941 = vadd.f32 %v939, %v940
        %v942 = vtanh.pop %v941
        %v943 = vmul.f32 %v938, %v942
        %s944 = scalar_lea.vmem %s399, %s785 [#allocation2]
        %945 = vst.msk [vmem:[%s944] sm:$0x3] %vm618, %v943
        %s946 = sadd.s32 %s19, 3
        %s947 = smul.u32 %s946, 2
        %s948 = scalar_lea.vmem %s404, %s947
        %v949 = vld [vmem:[%s948] sm:$0x3]
        %v951 = vsel %vm460, %v943, 0
        %953 = vmatpush.msra.mxu0 0.0
        %954 = vmatpush.msra.mxu0 0.0
        %955 = vmatpush.msra.mxu0 0.0
        %956 = vmatpush.msra.mxu0 0.0
        %957 = vmatpush.msra.mxu0 0.0
        %958 = vmatpush.msra.mxu0 0.0
        %959 = vmatpush.msra.mxu0 0.0
        %960 = vmatpush.msra.mxu0 0.0
        %961 = vmatpush.msra.mxu0 0.0
        %962 = vmatpush.msra.mxu0 0.0
        %963 = vmatpush.msra.mxu0 0.0
        %964 = vmatpush.msra.mxu0 0.0
        %965 = vmatpush.msra.mxu0 %v443
        %966 = vmatpush.msra.mxu0 %v442
        %967 = vmatpush.msra.mxu0 %v441
        %968 = vmatpush.msra.mxu0 %v440
        %969 = vmatmul.f32.gmra.mxu0 %v951
        %v970 = vpop.f32.mrf.mxu0
        %v971 = vadd.f32 0.0, %v970
        %972 = vdwg.mxu0
        %v973 = vadd.f32 %v949, %v971
        %v974 = vxor.u32 %v973, 2147483648
        %v975 = vmul.f32 %v974, 1.442695
        %v976 = vpow.pop %v975
        %v977 = vadd.f32 %v976, 1.0
        %v978 = vrcp.pop %v977
        %v979 = vmul.f32 %v977, %v978
        %v980 = vsub.f32 1.0, %v979
        %v981 = vmul.f32 %v978, %v980
        %v982 = vadd.f32 %v978, %v981
        %vm983 = vweird.f32 %v977
        %vm984 = vweird.f32 %v978
        %vm985 = vmor %vm983, %vm984
        %v986 = vsel %vm985, %v978, %v982
        %v987 = vand.u32 2147483647, %v977
        %vm988 = vcmp.eq.f32.partialorder %v987, 8.507059e+37
        %v989 = vand.u32 %v977, 2147483648
        %v990 = vor.u32 1.1754944e-38, %v989
        %v991 = vsel %vm988, %v990, %v986
        %v992 = vmul.f32 1.0, %v991
        %s993 = scalar_lea.vmem %s409, %s947
        %v994 = vld [vmem:[%s993] sm:$0x3]
        %995 = vmatpush.msra.mxu0 0.0
        %996 = vmatpush.msra.mxu0 0.0
        %997 = vmatpush.msra.mxu0 0.0
        %998 = vmatpush.msra.mxu0 0.0
        %999 = vmatpush.msra.mxu0 0.0
        %1000 = vmatpush.msra.mxu0 0.0
        %1001 = vmatpush.msra.mxu0 0.0
        %1002 = vmatpush.msra.mxu0 0.0
        %1003 = vmatpush.msra.mxu0 0.0
        %1004 = vmatpush.msra.mxu0 0.0
        %1005 = vmatpush.msra.mxu0 0.0
        %1006 = vmatpush.msra.mxu0 0.0
        %1007 = vmatpush.msra.mxu0 %v447
        %1008 = vmatpush.msra.mxu0 %v446
        %1009 = vmatpush.msra.mxu0 %v445
        %1010 = vmatpush.msra.mxu0 %v444
        %1011 = vmatmul.f32.gmra.mxu0 %v951
        %v1012 = vpop.f32.mrf.mxu0
        %v1013 = vadd.f32 0.0, %v1012
        %1014 = vdwg.mxu0
        %v1015 = vadd.f32 %v994, %v1013
        %v1016 = vxor.u32 %v1015, 2147483648
        %v1017 = vmul.f32 %v1016, 1.442695
        %v1018 = vpow.pop %v1017
        %v1019 = vadd.f32 %v1018, 1.0
        %v1020 = vrcp.pop %v1019
        %v1021 = vmul.f32 %v1019, %v1020
        %v1022 = vsub.f32 1.0, %v1021
        %v1023 = vmul.f32 %v1020, %v1022
        %v1024 = vadd.f32 %v1020, %v1023
        %vm1025 = vweird.f32 %v1019
        %vm1026 = vweird.f32 %v1020
        %vm1027 = vmor %vm1025, %vm1026
        %v1028 = vsel %vm1027, %v1020, %v1024
        %v1029 = vand.u32 2147483647, %v1019
        %vm1030 = vcmp.eq.f32.partialorder %v1029, 8.507059e+37
        %v1031 = vand.u32 %v1019, 2147483648
        %v1032 = vor.u32 1.1754944e-38, %v1031
        %v1033 = vsel %vm1030, %v1032, %v1028
        %v1034 = vmul.f32 1.0, %v1033
        %s1035 = scalar_lea.vmem %s414, %s947
        %v1036 = vld [vmem:[%s1035] sm:$0x3]
        %1037 = vmatpush.msra.mxu0 0.0
        %1038 = vmatpush.msra.mxu0 0.0
        %1039 = vmatpush.msra.mxu0 0.0
        %1040 = vmatpush.msra.mxu0 0.0
        %1041 = vmatpush.msra.mxu0 0.0
        %1042 = vmatpush.msra.mxu0 0.0
        %1043 = vmatpush.msra.mxu0 0.0
        %1044 = vmatpush.msra.mxu0 0.0
        %1045 = vmatpush.msra.mxu0 0.0
        %1046 = vmatpush.msra.mxu0 0.0
        %1047 = vmatpush.msra.mxu0 0.0
        %1048 = vmatpush.msra.mxu0 0.0
        %1049 = vmatpush.msra.mxu0 %v451
        %1050 = vmatpush.msra.mxu0 %v450
        %1051 = vmatpush.msra.mxu0 %v449
        %1052 = vmatpush.msra.mxu0 %v448
        %1053 = vmatmul.f32.gmra.mxu0 %v951
        %v1054 = vpop.f32.mrf.mxu0
        %v1055 = vadd.f32 0.0, %v1054
        %1056 = vdwg.mxu0
        %v1057 = vadd.f32 %v1036, %v1055
        %v1058 = vtanh.pop %v1057
        %s1059 = scalar_lea.vmem %s419, %s947
        %v1060 = vld [vmem:[%s1059] sm:$0x3]
        %1061 = vmatpush.msra.mxu0 0.0
        %1062 = vmatpush.msra.mxu0 0.0
        %1063 = vmatpush.msra.mxu0 0.0
        %1064 = vmatpush.msra.mxu0 0.0
        %1065 = vmatpush.msra.mxu0 0.0
        %1066 = vmatpush.msra.mxu0 0.0
        %1067 = vmatpush.msra.mxu0 0.0
        %1068 = vmatpush.msra.mxu0 0.0
        %1069 = vmatpush.msra.mxu0 0.0
        %1070 = vmatpush.msra.mxu0 0.0
        %1071 = vmatpush.msra.mxu0 0.0
        %1072 = vmatpush.msra.mxu0 0.0
        %1073 = vmatpush.msra.mxu0 %v455
        %1074 = vmatpush.msra.mxu0 %v454
        %1075 = vmatpush.msra.mxu0 %v453
        %1076 = vmatpush.msra.mxu0 %v452
        %1077 = vmatmul.f32.gmra.mxu0 %v951
        %v1078 = vpop.f32.mrf.mxu0
        %v1079 = vadd.f32 0.0, %v1078
        %1080 = vdwg.mxu0
        %v1081 = vadd.f32 %v1060, %v1079
        %v1082 = vxor.u32 %v1081, 2147483648
        %v1083 = vmul.f32 %v1082, 1.442695
        %v1084 = vpow.pop %v1083
        %v1085 = vadd.f32 %v1084, 1.0
        %v1086 = vrcp.pop %v1085
        %v1087 = vmul.f32 %v1085, %v1086
        %v1088 = vsub.f32 1.0, %v1087
        %v1089 = vmul.f32 %v1086, %v1088
        %v1090 = vadd.f32 %v1086, %v1089
        %vm1091 = vweird.f32 %v1085
        %vm1092 = vweird.f32 %v1086
        %vm1093 = vmor %vm1091, %vm1092
        %v1094 = vsel %vm1093, %v1086, %v1090
        %v1095 = vand.u32 2147483647, %v1085
        %vm1096 = vcmp.eq.f32.partialorder %v1095, 8.507059e+37
        %v1097 = vand.u32 %v1085, 2147483648
        %v1098 = vor.u32 1.1754944e-38, %v1097
        %v1099 = vsel %vm1096, %v1098, %v1094
        %v1100 = vmul.f32 1.0, %v1099
        %v1101 = vmul.f32 %v1034, %v941
        %v1102 = vmul.f32 %v992, %v1058
        %v1103 = vadd.f32 %v1101, %v1102
        %v1104 = vtanh.pop %v1103
        %v1105 = vmul.f32 %v1100, %v1104
        %s1106 = scalar_lea.vmem %s399, %s947 [#allocation2]
        %1107 = vst.msk [vmem:[%s1106] sm:$0x3] %vm618, %v1105
        %s1108 = ssub.s32 4, %s19
        %s1109 = smul.u32 %s1108, 2
        %s1110 = scalar_lea.vmem %s404, %s1109
        %v1111 = vld [vmem:[%s1110] sm:$0x3]
        %v1113 = vsel %vm460, %v1105, 0
        %1115 = vmatpush.msra.mxu0 0.0
        %1116 = vmatpush.msra.mxu0 0.0
        %1117 = vmatpush.msra.mxu0 0.0
        %1118 = vmatpush.msra.mxu0 0.0
        %1119 = vmatpush.msra.mxu0 0.0
        %1120 = vmatpush.msra.mxu0 0.0
        %1121 = vmatpush.msra.mxu0 0.0
        %1122 = vmatpush.msra.mxu0 0.0
        %1123 = vmatpush.msra.mxu0 0.0
        %1124 = vmatpush.msra.mxu0 0.0
        %1125 = vmatpush.msra.mxu0 0.0
        %1126 = vmatpush.msra.mxu0 0.0
        %1127 = vmatpush.msra.mxu0 %v443
        %1128 = vmatpush.msra.mxu0 %v442
        %1129 = vmatpush.msra.mxu0 %v441
        %1130 = vmatpush.msra.mxu0 %v440
        %1131 = vmatmul.f32.gmra.mxu0 %v1113
        %v1132 = vpop.f32.mrf.mxu0
        %v1133 = vadd.f32 0.0, %v1132
        %1134 = vdwg.mxu0
        %v1135 = vadd.f32 %v1111, %v1133
        %v1136 = vxor.u32 %v1135, 2147483648
        %v1137 = vmul.f32 %v1136, 1.442695
        %v1138 = vpow.pop %v1137
        %v1139 = vadd.f32 %v1138, 1.0
        %v1140 = vrcp.pop %v1139
        %v1141 = vmul.f32 %v1139, %v1140
        %v1142 = vsub.f32 1.0, %v1141
        %v1143 = vmul.f32 %v1140, %v1142
        %v1144 = vadd.f32 %v1140, %v1143
        %vm1145 = vweird.f32 %v1139
        %vm1146 = vweird.f32 %v1140
        %vm1147 = vmor %vm1145, %vm1146
        %v1148 = vsel %vm1147, %v1140, %v1144
        %v1149 = vand.u32 2147483647, %v1139
        %vm1150 = vcmp.eq.f32.partialorder %v1149, 8.507059e+37
        %v1151 = vand.u32 %v1139, 2147483648
        %v1152 = vor.u32 1.1754944e-38, %v1151
        %v1153 = vsel %vm1150, %v1152, %v1148
        %v1154 = vmul.f32 1.0, %v1153
        %s1155 = scalar_lea.vmem %s409, %s1109
        %v1156 = vld [vmem:[%s1155] sm:$0x3]
        %1157 = vmatpush.msra.mxu0 0.0
        %1158 = vmatpush.msra.mxu0 0.0
        %1159 = vmatpush.msra.mxu0 0.0
        %1160 = vmatpush.msra.mxu0 0.0
        %1161 = vmatpush.msra.mxu0 0.0
        %1162 = vmatpush.msra.mxu0 0.0
        %1163 = vmatpush.msra.mxu0 0.0
        %1164 = vmatpush.msra.mxu0 0.0
        %1165 = vmatpush.msra.mxu0 0.0
        %1166 = vmatpush.msra.mxu0 0.0
        %1167 = vmatpush.msra.mxu0 0.0
        %1168 = vmatpush.msra.mxu0 0.0
        %1169 = vmatpush.msra.mxu0 %v447
        %1170 = vmatpush.msra.mxu0 %v446
        %1171 = vmatpush.msra.mxu0 %v445
        %1172 = vmatpush.msra.mxu0 %v444
        %1173 = vmatmul.f32.gmra.mxu0 %v1113
        %v1174 = vpop.f32.mrf.mxu0
        %v1175 = vadd.f32 0.0, %v1174
        %1176 = vdwg.mxu0
        %v1177 = vadd.f32 %v1156, %v1175
        %v1178 = vxor.u32 %v1177, 2147483648
        %v1179 = vmul.f32 %v1178, 1.442695
        %v1180 = vpow.pop %v1179
        %v1181 = vadd.f32 %v1180, 1.0
        %v1182 = vrcp.pop %v1181
        %v1183 = vmul.f32 %v1181, %v1182
        %v1184 = vsub.f32 1.0, %v1183
        %v1185 = vmul.f32 %v1182, %v1184
        %v1186 = vadd.f32 %v1182, %v1185
        %vm1187 = vweird.f32 %v1181
        %vm1188 = vweird.f32 %v1182
        %vm1189 = vmor %vm1187, %vm1188
        %v1190 = vsel %vm1189, %v1182, %v1186
        %v1191 = vand.u32 2147483647, %v1181
        %vm1192 = vcmp.eq.f32.partialorder %v1191, 8.507059e+37
        %v1193 = vand.u32 %v1181, 2147483648
        %v1194 = vor.u32 1.1754944e-38, %v1193
        %v1195 = vsel %vm1192, %v1194, %v1190
        %v1196 = vmul.f32 1.0, %v1195
        %s1197 = scalar_lea.vmem %s414, %s1109
        %v1198 = vld [vmem:[%s1197] sm:$0x3]
        %1199 = vmatpush.msra.mxu0 0.0
        %1200 = vmatpush.msra.mxu0 0.0
        %1201 = vmatpush.msra.mxu0 0.0
        %1202 = vmatpush.msra.mxu0 0.0
        %1203 = vmatpush.msra.mxu0 0.0
        %1204 = vmatpush.msra.mxu0 0.0
        %1205 = vmatpush.msra.mxu0 0.0
        %1206 = vmatpush.msra.mxu0 0.0
        %1207 = vmatpush.msra.mxu0 0.0
        %1208 = vmatpush.msra.mxu0 0.0
        %1209 = vmatpush.msra.mxu0 0.0
        %1210 = vmatpush.msra.mxu0 0.0
        %1211 = vmatpush.msra.mxu0 %v451
        %1212 = vmatpush.msra.mxu0 %v450
        %1213 = vmatpush.msra.mxu0 %v449
        %1214 = vmatpush.msra.mxu0 %v448
        %1215 = vmatmul.f32.gmra.mxu0 %v1113
        %v1216 = vpop.f32.mrf.mxu0
        %v1217 = vadd.f32 0.0, %v1216
        %1218 = vdwg.mxu0
        %v1219 = vadd.f32 %v1198, %v1217
        %v1220 = vtanh.pop %v1219
        %s1221 = scalar_lea.vmem %s419, %s1109
        %v1222 = vld [vmem:[%s1221] sm:$0x3]
        %1223 = vmatpush.msra.mxu0 0.0
        %1224 = vmatpush.msra.mxu0 0.0
        %1225 = vmatpush.msra.mxu0 0.0
        %1226 = vmatpush.msra.mxu0 0.0
        %1227 = vmatpush.msra.mxu0 0.0
        %1228 = vmatpush.msra.mxu0 0.0
        %1229 = vmatpush.msra.mxu0 0.0
        %1230 = vmatpush.msra.mxu0 0.0
        %1231 = vmatpush.msra.mxu0 0.0
        %1232 = vmatpush.msra.mxu0 0.0
        %1233 = vmatpush.msra.mxu0 0.0
        %1234 = vmatpush.msra.mxu0 0.0
        %1235 = vmatpush.msra.mxu0 %v455
        %1236 = vmatpush.msra.mxu0 %v454
        %1237 = vmatpush.msra.mxu0 %v453
        %1238 = vmatpush.msra.mxu0 %v452
        %1239 = vmatmul.f32.gmra.mxu0 %v1113
        %v1240 = vpop.f32.mrf.mxu0
        %v1241 = vadd.f32 0.0, %v1240
        %1242 = vdwg.mxu0
        %v1243 = vadd.f32 %v1222, %v1241
        %v1244 = vxor.u32 %v1243, 2147483648
        %v1245 = vmul.f32 %v1244, 1.442695
        %v1246 = vpow.pop %v1245
        %v1247 = vadd.f32 %v1246, 1.0
        %v1248 = vrcp.pop %v1247
        %v1249 = vmul.f32 %v1247, %v1248
        %v1250 = vsub.f32 1.0, %v1249
        %v1251 = vmul.f32 %v1248, %v1250
        %v1252 = vadd.f32 %v1248, %v1251
        %vm1253 = vweird.f32 %v1247
        %vm1254 = vweird.f32 %v1248
        %vm1255 = vmor %vm1253, %vm1254
        %v1256 = vsel %vm1255, %v1248, %v1252
        %v1257 = vand.u32 2147483647, %v1247
        %vm1258 = vcmp.eq.f32.partialorder %v1257, 8.507059e+37
        %v1259 = vand.u32 %v1247, 2147483648
        %v1260 = vor.u32 1.1754944e-38, %v1259
        %v1261 = vsel %vm1258, %v1260, %v1256
        %v1262 = vmul.f32 1.0, %v1261
        %v1263 = vmul.f32 %v1196, %v1103
        %v1264 = vmul.f32 %v1154, %v1220
        %v1265 = vadd.f32 %v1263, %v1264
        %v1266 = vtanh.pop %v1265
        %v1267 = vmul.f32 %v1262, %v1266
        %s1268 = scalar_lea.vmem %s399, %s1109 [#allocation2]
        %1269 = vst.msk [vmem:[%s1268] sm:$0x3] %vm618, %v1267
        %s1270 = smul.u32 %s19, 4294967293
        %s1271 = sadd.s32 %s1270, 5
        %s1272 = smul.u32 %s1271, 2
        %s1273 = scalar_lea.vmem %s404, %s1272
        %v1274 = vld [vmem:[%s1273] sm:$0x3]
        %v1276 = vsel %vm460, %v1267, 0
        %1278 = vmatpush.msra.mxu0 0.0
        %1279 = vmatpush.msra.mxu0 0.0
        %1280 = vmatpush.msra.mxu0 0.0
        %1281 = vmatpush.msra.mxu0 0.0
        %1282 = vmatpush.msra.mxu0 0.0
        %1283 = vmatpush.msra.mxu0 0.0
        %1284 = vmatpush.msra.mxu0 0.0
        %1285 = vmatpush.msra.mxu0 0.0
        %1286 = vmatpush.msra.mxu0 0.0
        %1287 = vmatpush.msra.mxu0 0.0
        %1288 = vmatpush.msra.mxu0 0.0
        %1289 = vmatpush.msra.mxu0 0.0
        %1290 = vmatpush.msra.mxu0 %v443
        %1291 = vmatpush.msra.mxu0 %v442
        %1292 = vmatpush.msra.mxu0 %v441
        %1293 = vmatpush.msra.mxu0 %v440
        %1294 = vmatmul.f32.gmra.mxu0 %v1276
        %v1295 = vpop.f32.mrf.mxu0
        %v1296 = vadd.f32 0.0, %v1295
        %1297 = vdwg.mxu0
        %v1298 = vadd.f32 %v1274, %v1296
        %v1299 = vxor.u32 %v1298, 2147483648
        %v1300 = vmul.f32 %v1299, 1.442695
        %v1301 = vpow.pop %v1300
        %v1302 = vadd.f32 %v1301, 1.0
        %v1303 = vrcp.pop %v1302
        %v1304 = vmul.f32 %v1302, %v1303
        %v1305 = vsub.f32 1.0, %v1304
        %v1306 = vmul.f32 %v1303, %v1305
        %v1307 = vadd.f32 %v1303, %v1306
        %vm1308 = vweird.f32 %v1302
        %vm1309 = vweird.f32 %v1303
        %vm1310 = vmor %vm1308, %vm1309
        %v1311 = vsel %vm1310, %v1303, %v1307
        %v1312 = vand.u32 2147483647, %v1302
        %vm1313 = vcmp.eq.f32.partialorder %v1312, 8.507059e+37
        %v1314 = vand.u32 %v1302, 2147483648
        %v1315 = vor.u32 1.1754944e-38, %v1314
        %v1316 = vsel %vm1313, %v1315, %v1311
        %v1317 = vmul.f32 1.0, %v1316
        %s1318 = scalar_lea.vmem %s409, %s1272
        %v1319 = vld [vmem:[%s1318] sm:$0x3]
        %1320 = vmatpush.msra.mxu0 0.0
        %1321 = vmatpush.msra.mxu0 0.0
        %1322 = vmatpush.msra.mxu0 0.0
        %1323 = vmatpush.msra.mxu0 0.0
        %1324 = vmatpush.msra.mxu0 0.0
        %1325 = vmatpush.msra.mxu0 0.0
        %1326 = vmatpush.msra.mxu0 0.0
        %1327 = vmatpush.msra.mxu0 0.0
        %1328 = vmatpush.msra.mxu0 0.0
        %1329 = vmatpush.msra.mxu0 0.0
        %1330 = vmatpush.msra.mxu0 0.0
        %1331 = vmatpush.msra.mxu0 0.0
        %1332 = vmatpush.msra.mxu0 %v447
        %1333 = vmatpush.msra.mxu0 %v446
        %1334 = vmatpush.msra.mxu0 %v445
        %1335 = vmatpush.msra.mxu0 %v444
        %1336 = vmatmul.f32.gmra.mxu0 %v1276
        %v1337 = vpop.f32.mrf.mxu0
        %v1338 = vadd.f32 0.0, %v1337
        %1339 = vdwg.mxu0
        %v1340 = vadd.f32 %v1319, %v1338
        %v1341 = vxor.u32 %v1340, 2147483648
        %v1342 = vmul.f32 %v1341, 1.442695
        %v1343 = vpow.pop %v1342
        %v1344 = vadd.f32 %v1343, 1.0
        %v1345 = vrcp.pop %v1344
        %v1346 = vmul.f32 %v1344, %v1345
        %v1347 = vsub.f32 1.0, %v1346
        %v1348 = vmul.f32 %v1345, %v1347
        %v1349 = vadd.f32 %v1345, %v1348
        %vm1350 = vweird.f32 %v1344
        %vm1351 = vweird.f32 %v1345
        %vm1352 = vmor %vm1350, %vm1351
        %v1353 = vsel %vm1352, %v1345, %v1349
        %v1354 = vand.u32 2147483647, %v1344
        %vm1355 = vcmp.eq.f32.partialorder %v1354, 8.507059e+37
        %v1356 = vand.u32 %v1344, 2147483648
        %v1357 = vor.u32 1.1754944e-38, %v1356
        %v1358 = vsel %vm1355, %v1357, %v1353
        %v1359 = vmul.f32 1.0, %v1358
        %s1360 = scalar_lea.vmem %s414, %s1272
        %v1361 = vld [vmem:[%s1360] sm:$0x3]
        %1362 = vmatpush.msra.mxu0 0.0
        %1363 = vmatpush.msra.mxu0 0.0
        %1364 = vmatpush.msra.mxu0 0.0
        %1365 = vmatpush.msra.mxu0 0.0
        %1366 = vmatpush.msra.mxu0 0.0
        %1367 = vmatpush.msra.mxu0 0.0
        %1368 = vmatpush.msra.mxu0 0.0
        %1369 = vmatpush.msra.mxu0 0.0
        %1370 = vmatpush.msra.mxu0 0.0
        %1371 = vmatpush.msra.mxu0 0.0
        %1372 = vmatpush.msra.mxu0 0.0
        %1373 = vmatpush.msra.mxu0 0.0
        %1374 = vmatpush.msra.mxu0 %v451
        %1375 = vmatpush.msra.mxu0 %v450
        %1376 = vmatpush.msra.mxu0 %v449
        %1377 = vmatpush.msra.mxu0 %v448
        %1378 = vmatmul.f32.gmra.mxu0 %v1276
        %v1379 = vpop.f32.mrf.mxu0
        %v1380 = vadd.f32 0.0, %v1379
        %1381 = vdwg.mxu0
        %v1382 = vadd.f32 %v1361, %v1380
        %v1383 = vtanh.pop %v1382
        %s1384 = scalar_lea.vmem %s419, %s1272
        %v1385 = vld [vmem:[%s1384] sm:$0x3]
        %1386 = vmatpush.msra.mxu0 0.0
        %1387 = vmatpush.msra.mxu0 0.0
        %1388 = vmatpush.msra.mxu0 0.0
        %1389 = vmatpush.msra.mxu0 0.0
        %1390 = vmatpush.msra.mxu0 0.0
        %1391 = vmatpush.msra.mxu0 0.0
        %1392 = vmatpush.msra.mxu0 0.0
        %1393 = vmatpush.msra.mxu0 0.0
        %1394 = vmatpush.msra.mxu0 0.0
        %1395 = vmatpush.msra.mxu0 0.0
        %1396 = vmatpush.msra.mxu0 0.0
        %1397 = vmatpush.msra.mxu0 0.0
        %1398 = vmatpush.msra.mxu0 %v455
        %1399 = vmatpush.msra.mxu0 %v454
        %1400 = vmatpush.msra.mxu0 %v453
        %1401 = vmatpush.msra.mxu0 %v452
        %1402 = vmatmul.f32.gmra.mxu0 %v1276
        %v1403 = vpop.f32.mrf.mxu0
        %v1404 = vadd.f32 0.0, %v1403
        %1405 = vdwg.mxu0
        %v1406 = vadd.f32 %v1385, %v1404
        %v1407 = vxor.u32 %v1406, 2147483648
        %v1408 = vmul.f32 %v1407, 1.442695
        %v1409 = vpow.pop %v1408
        %v1410 = vadd.f32 %v1409, 1.0
        %v1411 = vrcp.pop %v1410
        %v1412 = vmul.f32 %v1410, %v1411
        %v1413 = vsub.f32 1.0, %v1412
        %v1414 = vmul.f32 %v1411, %v1413
        %v1415 = vadd.f32 %v1411, %v1414
        %vm1416 = vweird.f32 %v1410
        %vm1417 = vweird.f32 %v1411
        %vm1418 = vmor %vm1416, %vm1417
        %v1419 = vsel %vm1418, %v1411, %v1415
        %v1420 = vand.u32 2147483647, %v1410
        %vm1421 = vcmp.eq.f32.partialorder %v1420, 8.507059e+37
        %v1422 = vand.u32 %v1410, 2147483648
        %v1423 = vor.u32 1.1754944e-38, %v1422
        %v1424 = vsel %vm1421, %v1423, %v1419
        %v1425 = vmul.f32 1.0, %v1424
        %v1426 = vmul.f32 %v1359, %v1265
        %v1427 = vmul.f32 %v1317, %v1383
        %v1428 = vadd.f32 %v1426, %v1427
        %v1429 = vtanh.pop %v1428
        %v1430 = vmul.f32 %v1425, %v1429
        %s1431 = scalar_lea.vmem %s399, %s1272 [#allocation2]
        %1432 = vst.msk [vmem:[%s1431] sm:$0x3] %vm618, %v1430
        %s1433 = smul.u32 %s19, 4294967291
        %s1434 = sadd.s32 %s1433, 6
        %s1435 = smul.u32 %s1434, 2
        %s1436 = scalar_lea.vmem %s404, %s1435
        %v1437 = vld [vmem:[%s1436] sm:$0x3]
        %v1439 = vsel %vm460, %v1430, 0
        %1441 = vmatpush.msra.mxu0 0.0
        %1442 = vmatpush.msra.mxu0 0.0
        %1443 = vmatpush.msra.mxu0 0.0
        %1444 = vmatpush.msra.mxu0 0.0
        %1445 = vmatpush.msra.mxu0 0.0
        %1446 = vmatpush.msra.mxu0 0.0
        %1447 = vmatpush.msra.mxu0 0.0
        %1448 = vmatpush.msra.mxu0 0.0
        %1449 = vmatpush.msra.mxu0 0.0
        %1450 = vmatpush.msra.mxu0 0.0
        %1451 = vmatpush.msra.mxu0 0.0
        %1452 = vmatpush.msra.mxu0 0.0
        %1453 = vmatpush.msra.mxu0 %v443
        %1454 = vmatpush.msra.mxu0 %v442
        %1455 = vmatpush.msra.mxu0 %v441
        %1456 = vmatpush.msra.mxu0 %v440
        %1457 = vmatmul.f32.gmra.mxu0 %v1439
        %v1458 = vpop.f32.mrf.mxu0
        %v1459 = vadd.f32 0.0, %v1458
        %1460 = vdwg.mxu0
        %v1461 = vadd.f32 %v1437, %v1459
        %v1462 = vxor.u32 %v1461, 2147483648
        %v1463 = vmul.f32 %v1462, 1.442695
        %v1464 = vpow.pop %v1463
        %v1465 = vadd.f32 %v1464, 1.0
        %v1466 = vrcp.pop %v1465
        %v1467 = vmul.f32 %v1465, %v1466
        %v1468 = vsub.f32 1.0, %v1467
        %v1469 = vmul.f32 %v1466, %v1468
        %v1470 = vadd.f32 %v1466, %v1469
        %vm1471 = vweird.f32 %v1465
        %vm1472 = vweird.f32 %v1466
        %vm1473 = vmor %vm1471, %vm1472
        %v1474 = vsel %vm1473, %v1466, %v1470
        %v1475 = vand.u32 2147483647, %v1465
        %vm1476 = vcmp.eq.f32.partialorder %v1475, 8.507059e+37
        %v1477 = vand.u32 %v1465, 2147483648
        %v1478 = vor.u32 1.1754944e-38, %v1477
        %v1479 = vsel %vm1476, %v1478, %v1474
        %v1480 = vmul.f32 1.0, %v1479
        %s1481 = scalar_lea.vmem %s409, %s1435
        %v1482 = vld [vmem:[%s1481] sm:$0x3]
        %1483 = vmatpush.msra.mxu0 0.0
        %1484 = vmatpush.msra.mxu0 0.0
        %1485 = vmatpush.msra.mxu0 0.0
        %1486 = vmatpush.msra.mxu0 0.0
        %1487 = vmatpush.msra.mxu0 0.0
        %1488 = vmatpush.msra.mxu0 0.0
        %1489 = vmatpush.msra.mxu0 0.0
        %1490 = vmatpush.msra.mxu0 0.0
        %1491 = vmatpush.msra.mxu0 0.0
        %1492 = vmatpush.msra.mxu0 0.0
        %1493 = vmatpush.msra.mxu0 0.0
        %1494 = vmatpush.msra.mxu0 0.0
        %1495 = vmatpush.msra.mxu0 %v447
        %1496 = vmatpush.msra.mxu0 %v446
        %1497 = vmatpush.msra.mxu0 %v445
        %1498 = vmatpush.msra.mxu0 %v444
        %1499 = vmatmul.f32.gmra.mxu0 %v1439
        %v1500 = vpop.f32.mrf.mxu0
        %v1501 = vadd.f32 0.0, %v1500
        %1502 = vdwg.mxu0
        %v1503 = vadd.f32 %v1482, %v1501
        %v1504 = vxor.u32 %v1503, 2147483648
        %v1505 = vmul.f32 %v1504, 1.442695
        %v1506 = vpow.pop %v1505
        %v1507 = vadd.f32 %v1506, 1.0
        %v1508 = vrcp.pop %v1507
        %v1509 = vmul.f32 %v1507, %v1508
        %v1510 = vsub.f32 1.0, %v1509
        %v1511 = vmul.f32 %v1508, %v1510
        %v1512 = vadd.f32 %v1508, %v1511
        %vm1513 = vweird.f32 %v1507
        %vm1514 = vweird.f32 %v1508
        %vm1515 = vmor %vm1513, %vm1514
        %v1516 = vsel %vm1515, %v1508, %v1512
        %v1517 = vand.u32 2147483647, %v1507
        %vm1518 = vcmp.eq.f32.partialorder %v1517, 8.507059e+37
        %v1519 = vand.u32 %v1507, 2147483648
        %v1520 = vor.u32 1.1754944e-38, %v1519
        %v1521 = vsel %vm1518, %v1520, %v1516
        %v1522 = vmul.f32 1.0, %v1521
        %s1523 = scalar_lea.vmem %s414, %s1435
        %v1524 = vld [vmem:[%s1523] sm:$0x3]
        %1525 = vmatpush.msra.mxu0 0.0
        %1526 = vmatpush.msra.mxu0 0.0
        %1527 = vmatpush.msra.mxu0 0.0
        %1528 = vmatpush.msra.mxu0 0.0
        %1529 = vmatpush.msra.mxu0 0.0
        %1530 = vmatpush.msra.mxu0 0.0
        %1531 = vmatpush.msra.mxu0 0.0
        %1532 = vmatpush.msra.mxu0 0.0
        %1533 = vmatpush.msra.mxu0 0.0
        %1534 = vmatpush.msra.mxu0 0.0
        %1535 = vmatpush.msra.mxu0 0.0
        %1536 = vmatpush.msra.mxu0 0.0
        %1537 = vmatpush.msra.mxu0 %v451
        %1538 = vmatpush.msra.mxu0 %v450
        %1539 = vmatpush.msra.mxu0 %v449
        %1540 = vmatpush.msra.mxu0 %v448
        %1541 = vmatmul.f32.gmra.mxu0 %v1439
        %v1542 = vpop.f32.mrf.mxu0
        %v1543 = vadd.f32 0.0, %v1542
        %1544 = vdwg.mxu0
        %v1545 = vadd.f32 %v1524, %v1543
        %v1546 = vtanh.pop %v1545
        %s1547 = scalar_lea.vmem %s419, %s1435
        %v1548 = vld [vmem:[%s1547] sm:$0x3]
        %1549 = vmatpush.msra.mxu0 0.0
        %1550 = vmatpush.msra.mxu0 0.0
        %1551 = vmatpush.msra.mxu0 0.0
        %1552 = vmatpush.msra.mxu0 0.0
        %1553 = vmatpush.msra.mxu0 0.0
        %1554 = vmatpush.msra.mxu0 0.0
        %1555 = vmatpush.msra.mxu0 0.0
        %1556 = vmatpush.msra.mxu0 0.0
        %1557 = vmatpush.msra.mxu0 0.0
        %1558 = vmatpush.msra.mxu0 0.0
        %1559 = vmatpush.msra.mxu0 0.0
        %1560 = vmatpush.msra.mxu0 0.0
        %1561 = vmatpush.msra.mxu0 %v455
        %1562 = vmatpush.msra.mxu0 %v454
        %1563 = vmatpush.msra.mxu0 %v453
        %1564 = vmatpush.msra.mxu0 %v452
        %1565 = vmatmul.f32.gmra.mxu0 %v1439
        %v1566 = vpop.f32.mrf.mxu0
        %v1567 = vadd.f32 0.0, %v1566
        %1568 = vdwg.mxu0
        %v1569 = vadd.f32 %v1548, %v1567
        %v1570 = vxor.u32 %v1569, 2147483648
        %v1571 = vmul.f32 %v1570, 1.442695
        %v1572 = vpow.pop %v1571
        %v1573 = vadd.f32 %v1572, 1.0
        %v1574 = vrcp.pop %v1573
        %v1575 = vmul.f32 %v1573, %v1574
        %v1576 = vsub.f32 1.0, %v1575
        %v1577 = vmul.f32 %v1574, %v1576
        %v1578 = vadd.f32 %v1574, %v1577
        %vm1579 = vweird.f32 %v1573
        %vm1580 = vweird.f32 %v1574
        %vm1581 = vmor %vm1579, %vm1580
        %v1582 = vsel %vm1581, %v1574, %v1578
        %v1583 = vand.u32 2147483647, %v1573
        %vm1584 = vcmp.eq.f32.partialorder %v1583, 8.507059e+37
        %v1585 = vand.u32 %v1573, 2147483648
        %v1586 = vor.u32 1.1754944e-38, %v1585
        %v1587 = vsel %vm1584, %v1586, %v1582
        %v1588 = vmul.f32 1.0, %v1587
        %v1589 = vmul.f32 %v1522, %v1428
        %v1590 = vmul.f32 %v1480, %v1546
        %v1591 = vadd.f32 %v1589, %v1590
        %v1592 = vtanh.pop %v1591
        %v1593 = vmul.f32 %v1588, %v1592
        %s1594 = scalar_lea.vmem %s399, %s1435 [#allocation2]
        %1595 = vst.msk [vmem:[%s1594] sm:$0x3] %vm618, %v1593
        %s1596 = smul.u32 %s19, 4294967289
        %s1597 = sadd.s32 %s1596, 7
        %s1598 = smul.u32 %s1597, 2
        %s1599 = scalar_lea.vmem %s404, %s1598
        %v1600 = vld [vmem:[%s1599] sm:$0x3]
        %v1602 = vsel %vm460, %v1593, 0
        %1604 = vmatpush.msra.mxu0 0.0
        %1605 = vmatpush.msra.mxu0 0.0
        %1606 = vmatpush.msra.mxu0 0.0
        %1607 = vmatpush.msra.mxu0 0.0
        %1608 = vmatpush.msra.mxu0 0.0
        %1609 = vmatpush.msra.mxu0 0.0
        %1610 = vmatpush.msra.mxu0 0.0
        %1611 = vmatpush.msra.mxu0 0.0
        %1612 = vmatpush.msra.mxu0 0.0
        %1613 = vmatpush.msra.mxu0 0.0
        %1614 = vmatpush.msra.mxu0 0.0
        %1615 = vmatpush.msra.mxu0 0.0
        %1616 = vmatpush.msra.mxu0 %v443
        %1617 = vmatpush.msra.mxu0 %v442
        %1618 = vmatpush.msra.mxu0 %v441
        %1619 = vmatpush.msra.mxu0 %v440
        %1620 = vmatmul.f32.gmra.mxu0 %v1602
        %v1621 = vpop.f32.mrf.mxu0
        %v1622 = vadd.f32 0.0, %v1621
        %1623 = vdwg.mxu0
        %v1624 = vadd.f32 %v1600, %v1622
        %v1625 = vxor.u32 %v1624, 2147483648
        %v1626 = vmul.f32 %v1625, 1.442695
        %v1627 = vpow.pop %v1626
        %v1628 = vadd.f32 %v1627, 1.0
        %v1629 = vrcp.pop %v1628
        %v1630 = vmul.f32 %v1628, %v1629
        %v1631 = vsub.f32 1.0, %v1630
        %v1632 = vmul.f32 %v1629, %v1631
        %v1633 = vadd.f32 %v1629, %v1632
        %vm1634 = vweird.f32 %v1628
        %vm1635 = vweird.f32 %v1629
        %vm1636 = vmor %vm1634, %vm1635
        %v1637 = vsel %vm1636, %v1629, %v1633
        %v1638 = vand.u32 2147483647, %v1628
        %vm1639 = vcmp.eq.f32.partialorder %v1638, 8.507059e+37
        %v1640 = vand.u32 %v1628, 2147483648
        %v1641 = vor.u32 1.1754944e-38, %v1640
        %v1642 = vsel %vm1639, %v1641, %v1637
        %v1643 = vmul.f32 1.0, %v1642
        %s1644 = scalar_lea.vmem %s409, %s1598
        %v1645 = vld [vmem:[%s1644] sm:$0x3]
        %1646 = vmatpush.msra.mxu0 0.0
        %1647 = vmatpush.msra.mxu0 0.0
        %1648 = vmatpush.msra.mxu0 0.0
        %1649 = vmatpush.msra.mxu0 0.0
        %1650 = vmatpush.msra.mxu0 0.0
        %1651 = vmatpush.msra.mxu0 0.0
        %1652 = vmatpush.msra.mxu0 0.0
        %1653 = vmatpush.msra.mxu0 0.0
        %1654 = vmatpush.msra.mxu0 0.0
        %1655 = vmatpush.msra.mxu0 0.0
        %1656 = vmatpush.msra.mxu0 0.0
        %1657 = vmatpush.msra.mxu0 0.0
        %1658 = vmatpush.msra.mxu0 %v447
        %1659 = vmatpush.msra.mxu0 %v446
        %1660 = vmatpush.msra.mxu0 %v445
        %1661 = vmatpush.msra.mxu0 %v444
        %1662 = vmatmul.f32.gmra.mxu0 %v1602
        %v1663 = vpop.f32.mrf.mxu0
        %v1664 = vadd.f32 0.0, %v1663
        %1665 = vdwg.mxu0
        %v1666 = vadd.f32 %v1645, %v1664
        %v1667 = vxor.u32 %v1666, 2147483648
        %v1668 = vmul.f32 %v1667, 1.442695
        %v1669 = vpow.pop %v1668
        %v1670 = vadd.f32 %v1669, 1.0
        %v1671 = vrcp.pop %v1670
        %v1672 = vmul.f32 %v1670, %v1671
        %v1673 = vsub.f32 1.0, %v1672
        %v1674 = vmul.f32 %v1671, %v1673
        %v1675 = vadd.f32 %v1671, %v1674
        %vm1676 = vweird.f32 %v1670
        %vm1677 = vweird.f32 %v1671
        %vm1678 = vmor %vm1676, %vm1677
        %v1679 = vsel %vm1678, %v1671, %v1675
        %v1680 = vand.u32 2147483647, %v1670
        %vm1681 = vcmp.eq.f32.partialorder %v1680, 8.507059e+37
        %v1682 = vand.u32 %v1670, 2147483648
        %v1683 = vor.u32 1.1754944e-38, %v1682
        %v1684 = vsel %vm1681, %v1683, %v1679
        %v1685 = vmul.f32 1.0, %v1684
        %s1686 = scalar_lea.vmem %s414, %s1598
        %v1687 = vld [vmem:[%s1686] sm:$0x3]
        %1688 = vmatpush.msra.mxu0 0.0
        %1689 = vmatpush.msra.mxu0 0.0
        %1690 = vmatpush.msra.mxu0 0.0
        %1691 = vmatpush.msra.mxu0 0.0
        %1692 = vmatpush.msra.mxu0 0.0
        %1693 = vmatpush.msra.mxu0 0.0
        %1694 = vmatpush.msra.mxu0 0.0
        %1695 = vmatpush.msra.mxu0 0.0
        %1696 = vmatpush.msra.mxu0 0.0
        %1697 = vmatpush.msra.mxu0 0.0
        %1698 = vmatpush.msra.mxu0 0.0
        %1699 = vmatpush.msra.mxu0 0.0
        %1700 = vmatpush.msra.mxu0 %v451
        %1701 = vmatpush.msra.mxu0 %v450
        %1702 = vmatpush.msra.mxu0 %v449
        %1703 = vmatpush.msra.mxu0 %v448
        %1704 = vmatmul.f32.gmra.mxu0 %v1602
        %v1705 = vpop.f32.mrf.mxu0
        %v1706 = vadd.f32 0.0, %v1705
        %1707 = vdwg.mxu0
        %v1708 = vadd.f32 %v1687, %v1706
        %v1709 = vtanh.pop %v1708
        %s1710 = scalar_lea.vmem %s419, %s1598
        %v1711 = vld [vmem:[%s1710] sm:$0x3]
        %1712 = vmatpush.msra.mxu0 0.0
        %1713 = vmatpush.msra.mxu0 0.0
        %1714 = vmatpush.msra.mxu0 0.0
        %1715 = vmatpush.msra.mxu0 0.0
        %1716 = vmatpush.msra.mxu0 0.0
        %1717 = vmatpush.msra.mxu0 0.0
        %1718 = vmatpush.msra.mxu0 0.0
        %1719 = vmatpush.msra.mxu0 0.0
        %1720 = vmatpush.msra.mxu0 0.0
        %1721 = vmatpush.msra.mxu0 0.0
        %1722 = vmatpush.msra.mxu0 0.0
        %1723 = vmatpush.msra.mxu0 0.0
        %1724 = vmatpush.msra.mxu0 %v455
        %1725 = vmatpush.msra.mxu0 %v454
        %1726 = vmatpush.msra.mxu0 %v453
        %1727 = vmatpush.msra.mxu0 %v452
        %1728 = vmatmul.f32.gmra.mxu0 %v1602
        %v1729 = vpop.f32.mrf.mxu0
        %v1730 = vadd.f32 0.0, %v1729
        %1731 = vdwg.mxu0
        %v1732 = vadd.f32 %v1711, %v1730
        %v1733 = vxor.u32 %v1732, 2147483648
        %v1734 = vmul.f32 %v1733, 1.442695
        %v1735 = vpow.pop %v1734
        %v1736 = vadd.f32 %v1735, 1.0
        %v1737 = vrcp.pop %v1736
        %v1738 = vmul.f32 %v1736, %v1737
        %v1739 = vsub.f32 1.0, %v1738
        %v1740 = vmul.f32 %v1737, %v1739
        %v1741 = vadd.f32 %v1737, %v1740
        %vm1742 = vweird.f32 %v1736
        %vm1743 = vweird.f32 %v1737
        %vm1744 = vmor %vm1742, %vm1743
        %v1745 = vsel %vm1744, %v1737, %v1741
        %v1746 = vand.u32 2147483647, %v1736
        %vm1747 = vcmp.eq.f32.partialorder %v1746, 8.507059e+37
        %v1748 = vand.u32 %v1736, 2147483648
        %v1749 = vor.u32 1.1754944e-38, %v1748
        %v1750 = vsel %vm1747, %v1749, %v1745
        %v1751 = vmul.f32 1.0, %v1750
        %v1752 = vmul.f32 %v1685, %v1591
        %v1753 = vmul.f32 %v1643, %v1709
        %v1754 = vadd.f32 %v1752, %v1753
        %v1755 = vtanh.pop %v1754
        %v1756 = vmul.f32 %v1751, %v1755
        %s1757 = scalar_lea.vmem %s399, %s1598 [#allocation2]
        %1758 = vst.msk [vmem:[%s1757] sm:$0x3] %vm618, %v1756
        %s1759 = sand.u32 %s235, 1
        %s1760 = sand.u32 %s235, 1
        %s1761 = smul.addr %s1760, 16
        %s1762 = scalar_lea.vmem [#allocation2], %s1761
        // Predicated region
        $region53: #{text_rnn_forward.2} parent=51 // pred_check
          %p1763 = pneg %p245
        $region54: #{text_rnn_forward.2} parent=51 // pred_check_branch
          %1765 = sbr.rel (%p1763) target = $region56
        $region55: #{text_rnn_forward.2} parent=51 // pred_region
          %s1766 = smul.addr %s19, 2
          %s1767 = scalar_lea.vmem %s8, %s1766
          // Predicated region
          $region57: #{text_rnn_forward.2} parent=55 // pred_check
            _
          $region58: #{text_rnn_forward.2} parent=55 // pred_check_branch
            %1769 = sbr.rel (0) target = $region60
          $region59: #{text_rnn_forward.2} parent=55 // pred_region
            // Predicated region
            $region61: #{text_rnn_forward.2} parent=59 // pred_check
              _
            $region62: #{text_rnn_forward.2} parent=59 // pred_check_branch
              %1771 = sbr.rel target = $region64
            $region63: #{text_rnn_forward.2} parent=59 // pred_region
              // Predicated region
              $region76: #{text_rnn_forward.2} parent=63 // pred_check
                _
              $region77: #{text_rnn_forward.2} parent=63 // pred_check_branch
                %1801 = sbr.rel (0) target = $region79
              $region78: #{text_rnn_forward.2} parent=63 // pred_region
                loop: start=0, step=1, limit=1
                $region80: #{text_rnn_forward.2} parent=78 // loop_pre_header
                  _
                $region81: #{text_rnn_forward.2} parent=78 // loop_header
                  %s1803 = sphi 0, %s1807
                  %p1804 = scmp.ge.s32.totalorder %s1803, 1
                  %s1808 = sphi %s1762, %s1762
                  %s1809 = sphi %s1767, %s1767
                $region82: #{text_rnn_forward.2} parent=78 // loop_header_branch
                  %1806 = sbr.rel (%p1804) target = $region86
                $region83: #{text_rnn_forward.2} parent=78 // loop_body
                  _
                $region84: #{text_rnn_forward.2} parent=78 // loop_footer
                  %s1807 = sadd.s32 1, %s1803
                $region85: #{text_rnn_forward.2} parent=78 // loop_footer_branch
                  %1802 = sbr.rel target = $region81
                $region86: #{text_rnn_forward.2} parent=78 // loop_exit
                  _
                %s1811 = ssub.s32 4, 1
                loop: start=0, step=1, limit=1
                $region87: #{text_rnn_forward.2} parent=78 // loop_pre_header
                  _
                $region88: #{text_rnn_forward.2} parent=78 // loop_header
                  %s1813 = sphi 0, %s1817
                  %p1814 = scmp.ge.s32.totalorder %s1813, 1
                  %s1818 = sphi %s1762, %s1762
                  %s1819 = sphi %s1767, %s1767
                $region89: #{text_rnn_forward.2} parent=78 // loop_header_branch
                  %1816 = sbr.rel (%p1814) target = $region93
                $region90: #{text_rnn_forward.2} parent=78 // loop_body
                  %v1820 = vld [vmem:[%s1818] sm:%s1811]
                  %1821 = vst [vmem:[%s1819] sm:%s1811] %v1820
                  %v1822 = vld [vmem:[%s1818 + $0x2] sm:%s1811]
                  %1823 = vst [vmem:[%s1819 + $0x4] sm:%s1811] %v1822
                  %v1824 = vld [vmem:[%s1818 + $0x4] sm:%s1811]
                  %1825 = vst [vmem:[%s1819 + $0x8] sm:%s1811] %v1824
                  %v1826 = vld [vmem:[%s1818 + $0x6] sm:%s1811]
                  %1827 = vst [vmem:[%s1819 + $0xc] sm:%s1811] %v1826
                  %v1828 = vld [vmem:[%s1818 + $0x8] sm:%s1811]
                  %1829 = vst [vmem:[%s1819 + $0x10] sm:%s1811] %v1828
                  %v1830 = vld [vmem:[%s1818 + $0xa] sm:%s1811]
                  %1831 = vst [vmem:[%s1819 + $0x14] sm:%s1811] %v1830
                  %v1832 = vld [vmem:[%s1818 + $0xc] sm:%s1811]
                  %1833 = vst [vmem:[%s1819 + $0x18] sm:%s1811] %v1832
                  %v1834 = vld [vmem:[%s1818 + $0xe] sm:%s1811]
                  %1835 = vst [vmem:[%s1819 + $0x1c] sm:%s1811] %v1834
                $region91: #{text_rnn_forward.2} parent=78 // loop_footer
                  %s1817 = sadd.s32 1, %s1813
                $region92: #{text_rnn_forward.2} parent=78 // loop_footer_branch
                  %1812 = sbr.rel target = $region88
                $region93: #{text_rnn_forward.2} parent=78 // loop_exit
                  _
              $region79: #{text_rnn_forward.2} parent=63 // pred_fallthru
                _
            $region64: #{text_rnn_forward.2} parent=59 // pred_fallthru
              _
            // Predicated region
            $region65: #{text_rnn_forward.2} parent=59 // pred_check
              _
            $region66: #{text_rnn_forward.2} parent=59 // pred_check_branch
              %1773 = sbr.rel (0) target = $region68
            $region67: #{text_rnn_forward.2} parent=59 // pred_region
              %s1775 = ssub.s32 4, 1
              loop: start=0, step=1, limit=1
              $region69: #{text_rnn_forward.2} parent=67 // loop_pre_header
                _
              $region70: #{text_rnn_forward.2} parent=67 // loop_header
                %s1777 = sphi 0, %s1781
                %p1778 = scmp.ge.s32.totalorder %s1777, 1
                %s1782 = sphi %s1762, %s1762
                %s1783 = sphi %s1767, %s1767
              $region71: #{text_rnn_forward.2} parent=67 // loop_header_branch
                %1780 = sbr.rel (%p1778) target = $region75
              $region72: #{text_rnn_forward.2} parent=67 // loop_body
                %v1784 = vld [vmem:[%s1782] sm:%s1775]
                %1785 = vst [vmem:[%s1783] sm:%s1775] %v1784
                %v1786 = vld [vmem:[%s1782 + $0x2] sm:%s1775]
                %1787 = vst [vmem:[%s1783 + $0x4] sm:%s1775] %v1786
                %v1788 = vld [vmem:[%s1782 + $0x4] sm:%s1775]
                %1789 = vst [vmem:[%s1783 + $0x8] sm:%s1775] %v1788
                %v1790 = vld [vmem:[%s1782 + $0x6] sm:%s1775]
                %1791 = vst [vmem:[%s1783 + $0xc] sm:%s1775] %v1790
                %v1792 = vld [vmem:[%s1782 + $0x8] sm:%s1775]
                %1793 = vst [vmem:[%s1783 + $0x10] sm:%s1775] %v1792
                %v1794 = vld [vmem:[%s1782 + $0xa] sm:%s1775]
                %1795 = vst [vmem:[%s1783 + $0x14] sm:%s1775] %v1794
                %v1796 = vld [vmem:[%s1782 + $0xc] sm:%s1775]
                %1797 = vst [vmem:[%s1783 + $0x18] sm:%s1775] %v1796
                %v1798 = vld [vmem:[%s1782 + $0xe] sm:%s1775]
                %1799 = vst [vmem:[%s1783 + $0x1c] sm:%s1775] %v1798
              $region73: #{text_rnn_forward.2} parent=67 // loop_footer
                %s1781 = sadd.s32 1, %s1777
              $region74: #{text_rnn_forward.2} parent=67 // loop_footer_branch
                %1776 = sbr.rel target = $region70
              $region75: #{text_rnn_forward.2} parent=67 // loop_exit
                _
            $region68: #{text_rnn_forward.2} parent=59 // pred_fallthru
              _
          $region60: #{text_rnn_forward.2} parent=55 // pred_fallthru
            _
          %1836 = vnop
        $region56: #{text_rnn_forward.2} parent=51 // pred_fallthru
          _
      $region52: #{text_rnn_forward.2} parent=5 // pred_fallthru
        _
      %p1837 = scmp.le.s32.totalorder 2, %s14
      // Predicated region
      $region94: #{text_rnn_forward.2} parent=5 // pred_check
        %p1838 = pneg %p1837
      $region95: #{text_rnn_forward.2} parent=5 // pred_check_branch
        %1840 = sbr.rel (%p1838) target = $region97
      $region96: #{text_rnn_forward.2} parent=5 // pred_region
        %s1841 = ssub.s32 %s14, 2
        // Predicated region
        $region98: #{text_rnn_forward.2} parent=96 // pred_check
          %p1842 = pneg %p251
        $region99: #{text_rnn_forward.2} parent=96 // pred_check_branch
          %1844 = sbr.rel (%p1842) target = $region101
        $region100: #{text_rnn_forward.2} parent=96 // pred_region
          %s1845 = sand.u32 %s236, 1
          %s1846 = sand.u32 %s236, 1
          %s1847 = smul.addr %s1846, 16
          %s1848 = scalar_lea.vmem [#allocation2], %s1847
        $region101: #{text_rnn_forward.2} parent=96 // pred_fallthru
          _
      $region97: #{text_rnn_forward.2} parent=5 // pred_fallthru
        _
    $region6: #{text_rnn_forward.2} parent=1 // loop_footer
      %s18 = sadd.s32 1, %s14
    $region7: #{text_rnn_forward.2} parent=1 // loop_footer_branch
      %13 = sbr.rel target = $region3
    $region8: #{text_rnn_forward.2} parent=1 // loop_exit
      _

</llo_original>
